<compile_context>
chip_gen: v7x
topology: tpu7x:2x2x1
jax: 0.10.0
libtpu: 0.0.40
codegen_flags: <defaults>
</compile_context>

<pallas_src>
import functools

import numpy as np
import jax
import jax.numpy as jnp
from jax import lax
from jax.experimental import pallas as pl
from jax.experimental.pallas import tpu as pltpu

BN_EPS = 1e-5
NEG_SLOPE = 0.1


# ---------------------------------------------------------------------------
# Fused Pallas kernel: 20 ResBlocks + 1x1 head + bilinear resize + sigmoid
# ---------------------------------------------------------------------------
def _fused_kernel(x_ref, masks_ref,
                  w0c1_ref, t0c1_ref, wsc_ref, bsc_ref, w0c2_ref, t0c2_ref,
                  wc1_ref, tc1_ref, wc2_ref, tc2_ref,
                  whead_ref, bhead_ref, mt_ref,
                  o_ref, *, img_w, num_blocks):
    masks = masks_ref[...]                      # (9, P) {0,1} border masks

    def lrelu(v):
        return jnp.where(v >= 0.0, v, NEG_SLOPE * v)

    def taps(a):
        """(C, P) -> (9*C, P): the 9 shifted 3x3 taps (zero-padded borders)."""
        pieces = []
        k = 0
        for dy in (-1, 0, 1):
            for dx in (-1, 0, 1):
                s = dy * img_w + dx             # flat-index shift of this tap
                if s == 0:
                    pieces.append(a)
                else:
                    # cyclic roll; wrapped (out-of-image) entries are zeroed
                    # by the mask, exactly reproducing zero padding.
                    pieces.append(jnp.roll(a, -s, axis=1) * masks[k:k + 1, :])
                k += 1
        return jnp.concatenate(pieces, axis=0)

    def conv(w, t, a):
        """Fused conv3x3+BN: single matmul over 9*Cin, plus folded shift."""
        return jnp.dot(w, taps(a), preferred_element_type=jnp.float32) + t

    # ---- block 0: Cin=3 (zero-padded channels), 1x1-conv shortcut ----
    x0 = x_ref[...]                                              # (Cpad, P)
    h = lrelu(conv(w0c1_ref[...], t0c1_ref[...], x0))
    sc = (jnp.dot(wsc_ref[...], x0, preferred_element_type=jnp.float32)
          + bsc_ref[...])
    x = lrelu(conv(w0c2_ref[...], t0c2_ref[...], h) + sc)

    # ---- blocks 1 .. num_blocks-1: Cin=Cout=16, identity shortcut ----
    def body(b, xc):
        hb = lrelu(conv(wc1_ref[b], tc1_ref[b], xc))
        return lrelu(conv(wc2_ref[b], tc2_ref[b], hb) + xc)

    x = lax.fori_loop(0, num_blocks - 1, body, x)

    # ---- head 1x1 conv + bilinear resize (one matmul) + sigmoid ----
    heat = (jnp.dot(whead_ref[...], x, preferred_element_type=jnp.float32)
            + bhead_ref[...])                                    # (K, P)
    out = jnp.dot(heat, mt_ref[...], preferred_element_type=jnp.float32)
    o_ref[...] = jax.nn.sigmoid(out)                             # (K, Hh*Ww)


# ---------------------------------------------------------------------------
# Host-side helpers (compile-time constants)
# ---------------------------------------------------------------------------
def _tap_masks(h, w):
    """(9, H*W) {0,1} masks: which output pixels have a valid (dy,dx) source."""
    m = np.zeros((9, h * w), np.float32)
    ys, xs = np.meshgrid(np.arange(h), np.arange(w), indexing="ij")
    k = 0
    for dy in (-1, 0, 1):
        for dx in (-1, 0, 1):
            valid = ((ys + dy >= 0) & (ys + dy < h) &
                     (xs + dx >= 0) & (xs + dx < w))
            m[k] = valid.reshape(-1).astype(np.float32)
            k += 1
    return m


def _bilinear_matrix(out_size, in_size):
    """PyTorch bilinear (align_corners=False) resampling matrix (out, in)."""
    m = np.zeros((out_size, in_size), np.float32)
    scale = in_size / out_size
    for i in range(out_size):
        src = max((i + 0.5) * scale - 0.5, 0.0)
        i0 = min(int(np.floor(src)), in_size - 1)
        i1 = min(i0 + 1, in_size - 1)
        lam = src - i0
        m[i, i0] += 1.0 - lam
        m[i, i1] += lam
    return m


# ---------------------------------------------------------------------------
# Parameters (deterministic, synthetic), BN folded + packed for the kernel
# ---------------------------------------------------------------------------
def init_params(seed=0, num_keypoints=1, num_blocks=20, cin_img=3, cin_pad=8):
    assert num_blocks >= 2
    rng = np.random.default_rng(seed)
    C = 16

    def conv_init(cin, cout, k):
        bound = 1.0 / np.sqrt(cin * k * k)
        w = rng.uniform(-bound, bound, size=(cout, cin, k, k)).astype(np.float32)
        b = rng.uniform(-bound, bound, size=(cout,)).astype(np.float32)
        return w, b

    def bn_init(c):
        gamma = rng.uniform(0.9, 1.1, size=(c,)).astype(np.float32)
        beta = (0.01 * rng.standard_normal(c)).astype(np.float32)
        mean = (0.01 * rng.standard_normal(c)).astype(np.float32)
        var = rng.uniform(0.9, 1.1, size=(c,)).astype(np.float32)
        return gamma, beta, mean, var

    def fold3x3(w, b, bn, cin_p):
        """(Cout,Cin,3,3)+BN -> (Cout, 9*cin_p) folded weight, (Cout,1) shift."""
        gamma, beta, mean, var = bn
        s = gamma / np.sqrt(var + BN_EPS)
        cout, cin = w.shape[:2]
        wp = np.zeros((cout, cin_p, 3, 3), np.float32)
        wp[:, :cin] = w
        wm = np.transpose(wp, (0, 2, 3, 1)).reshape(cout, 9 * cin_p)
        wm = wm * s[:, None]                       # fold BN scale into weights
        t = ((b - mean) * s + beta).reshape(cout, 1)
        return wm.astype(np.float32), t.astype(np.float32)

    # block 0 (3 -> 16, has 1x1 shortcut); input channels padded to cin_pad
    w1, b1 = conv_init(cin_img, C, 3)
    w2, b2 = conv_init(C, C, 3)
    w0c1, t0c1 = fold3x3(w1, b1, bn_init(C), cin_pad)
    w0c2, t0c2 = fold3x3(w2, b2, bn_init(C), C)
    ws, bs = conv_init(cin_img, C, 1)
    wsc = np.zeros((C, cin_pad), np.float32)
    wsc[:, :cin_img] = ws[:, :, 0, 0]
    bsc = bs.reshape(C, 1)

    # blocks 1..num_blocks-1 (16 -> 16, identity shortcut), stacked
    wc1, tc1, wc2, tc2 = [], [], [], []
    for _ in range(num_blocks - 1):
        wa, ba = conv_init(C, C, 3)
        wb, bb = conv_init(C, C, 3)
        wma, ta = fold3x3(wa, ba, bn_init(C), C)
        wmb, tb = fold3x3(wb, bb, bn_init(C), C)
        wc1.append(wma); tc1.append(ta); wc2.append(wmb); tc2.append(tb)

    wo, bo = conv_init(C, num_keypoints, 1)
    return {
        "w0c1": jnp.asarray(w0c1), "t0c1": jnp.asarray(t0c1),
        "wsc": jnp.asarray(wsc), "bsc": jnp.asarray(bsc),
        "w0c2": jnp.asarray(w0c2), "t0c2": jnp.asarray(t0c2),
        "wc1": jnp.asarray(np.stack(wc1)), "tc1": jnp.asarray(np.stack(tc1)),
        "wc2": jnp.asarray(np.stack(wc2)), "tc2": jnp.asarray(np.stack(tc2)),
        "whead": jnp.asarray(wo[:, :, 0, 0]),
        "bhead": jnp.asarray(bo.reshape(-1, 1)),
    }


# ---------------------------------------------------------------------------
# Forward pass: one fused pallas_call
# ---------------------------------------------------------------------------
def heatmap_model_forward(x_nchw, params, *, heatmap_size):
    n, c, h, w = x_nchw.shape
    p = h * w
    hh, ww = heatmap_size
    cpad = params["wsc"].shape[1]
    c16 = params["w0c2"].shape[0]
    nk = params["whead"].shape[0]
    nb1 = params["wc1"].shape[0]
    num_blocks = nb1 + 1

    # NCHW -> channels on sublanes, flattened pixels on lanes; pad C to cpad.
    x = x_nchw.astype(jnp.float32).reshape(n, c, p)
    x = jnp.pad(x, ((0, 0), (0, cpad - c), (0, 0)))

    masks = jnp.asarray(_tap_masks(h, w))                           # (9, P)
    rh = _bilinear_matrix(hh, h)
    rw = _bilinear_matrix(ww, w)
    mt = jnp.asarray(np.kron(rh, rw).T)                             # (P, Hh*Ww)

    kernel = functools.partial(_fused_kernel, img_w=w, num_blocks=num_blocks)
    out = pl.pallas_call(
        kernel,
        out_shape=jax.ShapeDtypeStruct((n, nk, hh * ww), jnp.float32),
        grid=(n,),
        in_specs=[
            pl.BlockSpec((pl.Squeezed(), cpad, p), lambda i: (i, 0, 0)),   # x
            pl.BlockSpec((9, p), lambda i: (0, 0)),                        # masks
            pl.BlockSpec((c16, 9 * cpad), lambda i: (0, 0)),               # w0c1
            pl.BlockSpec((c16, 1), lambda i: (0, 0)),                      # t0c1
            pl.BlockSpec((c16, cpad), lambda i: (0, 0)),                   # wsc
            pl.BlockSpec((c16, 1), lambda i: (0, 0)),                      # bsc
            pl.BlockSpec((c16, 9 * c16), lambda i: (0, 0)),                # w0c2
            pl.BlockSpec((c16, 1), lambda i: (0, 0)),                      # t0c2
            pl.BlockSpec((nb1, c16, 9 * c16), lambda i: (0, 0, 0)),        # wc1
            pl.BlockSpec((nb1, c16, 1), lambda i: (0, 0, 0)),              # tc1
            pl.BlockSpec((nb1, c16, 9 * c16), lambda i: (0, 0, 0)),        # wc2
            pl.BlockSpec((nb1, c16, 1), lambda i: (0, 0, 0)),              # tc2
            pl.BlockSpec((nk, c16), lambda i: (0, 0)),                     # whead
            pl.BlockSpec((nk, 1), lambda i: (0, 0)),                       # bhead
            pl.BlockSpec((p, hh * ww), lambda i: (0, 0)),                  # mt
        ],
        out_specs=pl.BlockSpec((pl.Squeezed(), nk, hh * ww),
                               lambda i: (i, 0, 0)),
        compiler_params=pltpu.CompilerParams(
            dimension_semantics=("parallel",)),
    )(x, masks,
      params["w0c1"], params["t0c1"], params["wsc"], params["bsc"],
      params["w0c2"], params["t0c2"],
      params["wc1"], params["tc1"], params["wc2"], params["tc2"],
      params["whead"], params["bhead"], mt)

    return out.reshape(n, nk, hh, ww)


if __name__ == "__main__":
    # Small shapes consistent with the module: N=2, C=3, H=W=16,
    # num_keypoints=1, heatmap_size=(24, 32).
    key = jax.random.PRNGKey(0)
    x = jax.random.normal(key, (2, 3, 16, 16), dtype=jnp.float32)  # NCHW input

    params = init_params(seed=0, num_keypoints=1, num_blocks=20)
    heatmap_size = (24, 32)

    fwd = jax.jit(functools.partial(heatmap_model_forward,
                                    heatmap_size=heatmap_size))
    out = fwd(x, params)
    jax.block_until_ready(out)

    assert out.shape == (2, 1, 24, 32), out.shape
    assert bool(jnp.all(jnp.isfinite(out)))
    assert bool(jnp.all((out >= 0.0) & (out <= 1.0)))  # sigmoid range
    print("KERNEL_OK")
</pallas_src>

<mosaic_0001>
module attributes {stable_mosaic.version = 11 : i64} {
  func.func @_fused_kernel(%arg0: i32, %arg1: memref<1x8x256xf32, #tpu.memory_space<vmem>>, %arg2: memref<9x256xf32, #tpu.memory_space<vmem>>, %arg3: memref<16x72xf32, #tpu.memory_space<vmem>>, %arg4: memref<16x1xf32, #tpu.memory_space<vmem>>, %arg5: memref<16x8xf32, #tpu.memory_space<vmem>>, %arg6: memref<16x1xf32, #tpu.memory_space<vmem>>, %arg7: memref<16x144xf32, #tpu.memory_space<vmem>>, %arg8: memref<16x1xf32, #tpu.memory_space<vmem>>, %arg9: memref<19x16x144xf32, #tpu.memory_space<vmem>>, %arg10: memref<19x16x1xf32, #tpu.memory_space<vmem>>, %arg11: memref<19x16x144xf32, #tpu.memory_space<vmem>>, %arg12: memref<19x16x1xf32, #tpu.memory_space<vmem>>, %arg13: memref<1x16xf32, #tpu.memory_space<vmem>>, %arg14: memref<1x1xf32, #tpu.memory_space<vmem>>, %arg15: memref<256x768xf32, #tpu.memory_space<vmem>>, %arg16: memref<1x1x768xf32, #tpu.memory_space<vmem>>) attributes {dimension_semantics = [#tpu.dimension_semantics<parallel>], iteration_bounds = array<i64: 2>, scalar_prefetch = 0 : i64, scratch_operands = 0 : i64, tpu.core_type = #tpu.core_type<tc>, window_params = [{transform_indices = @transform_0, window_bounds = array<i64: 1, 8, 256>}, {pipeline_mode = #tpu.pipeline_mode<synchronous>, transform_indices = @transform_1, window_bounds = array<i64: 9, 256>}, {pipeline_mode = #tpu.pipeline_mode<synchronous>, transform_indices = @transform_2, window_bounds = array<i64: 16, 72>}, {pipeline_mode = #tpu.pipeline_mode<synchronous>, transform_indices = @transform_3, window_bounds = array<i64: 16, 1>}, {pipeline_mode = #tpu.pipeline_mode<synchronous>, transform_indices = @transform_4, window_bounds = array<i64: 16, 8>}, {pipeline_mode = #tpu.pipeline_mode<synchronous>, transform_indices = @transform_5, window_bounds = array<i64: 16, 1>}, {pipeline_mode = #tpu.pipeline_mode<synchronous>, transform_indices = @transform_6, window_bounds = array<i64: 16, 144>}, {pipeline_mode = #tpu.pipeline_mode<synchronous>, transform_indices = @transform_7, window_bounds = array<i64: 16, 1>}, {pipeline_mode = #tpu.pipeline_mode<synchronous>, transform_indices = @transform_8, window_bounds = array<i64: 19, 16, 144>}, {pipeline_mode = #tpu.pipeline_mode<synchronous>, transform_indices = @transform_9, window_bounds = array<i64: 19, 16, 1>}, {pipeline_mode = #tpu.pipeline_mode<synchronous>, transform_indices = @transform_10, window_bounds = array<i64: 19, 16, 144>}, {pipeline_mode = #tpu.pipeline_mode<synchronous>, transform_indices = @transform_11, window_bounds = array<i64: 19, 16, 1>}, {pipeline_mode = #tpu.pipeline_mode<synchronous>, transform_indices = @transform_12, window_bounds = array<i64: 1, 16>}, {pipeline_mode = #tpu.pipeline_mode<synchronous>, transform_indices = @transform_13, window_bounds = array<i64: 1, 1>}, {pipeline_mode = #tpu.pipeline_mode<synchronous>, transform_indices = @transform_14, window_bounds = array<i64: 256, 768>}, {transform_indices = @transform_15, window_bounds = array<i64: 1, 1, 768>}]} {
    %c0 = arith.constant 0 : index
    %c0_0 = arith.constant 0 : index
    %0 = vector.load %arg2[%c0, %c0_0] : memref<9x256xf32, #tpu.memory_space<vmem>>, vector<9x256xf32>
    %c0_1 = arith.constant 0 : index
    %c0_2 = arith.constant 0 : index
    %c0_3 = arith.constant 0 : index
    %1 = vector.load %arg1[%c0_1, %c0_2, %c0_3] : memref<1x8x256xf32, #tpu.memory_space<vmem>>, vector<1x8x256xf32>
    %2 = vector.shape_cast %1 : vector<1x8x256xf32> to vector<8x256xf32>
    %c0_4 = arith.constant 0 : index
    %c0_5 = arith.constant 0 : index
    %3 = vector.load %arg3[%c0_4, %c0_5] : memref<16x72xf32, #tpu.memory_space<vmem>>, vector<16x72xf32>
    %c0_6 = arith.constant 0 : index
    %c0_7 = arith.constant 0 : index
    %4 = vector.load %arg4[%c0_6, %c0_7] : memref<16x1xf32, #tpu.memory_space<vmem>>, vector<16x1xf32>
    %5 = vector.extract_strided_slice %2 {offsets = [0, 239], sizes = [8, 17], strides = [1, 1]} : vector<8x256xf32> to vector<8x17xf32>
    %6 = vector.extract_strided_slice %2 {offsets = [0, 0], sizes = [8, 239], strides = [1, 1]} : vector<8x256xf32> to vector<8x239xf32>
    %7 = tpu.concatenate %5, %6 in 1 : vector<8x17xf32>, vector<8x239xf32> -> vector<8x256xf32>
    %8 = vector.extract_strided_slice %0 {offsets = [0, 0], sizes = [1, 256], strides = [1, 1]} : vector<9x256xf32> to vector<1x256xf32>
    %9 = vector.broadcast %8 : vector<1x256xf32> to vector<8x256xf32>
    %10 = arith.mulf %7, %9 : vector<8x256xf32>
    %11 = vector.extract_strided_slice %2 {offsets = [0, 240], sizes = [8, 16], strides = [1, 1]} : vector<8x256xf32> to vector<8x16xf32>
    %12 = vector.extract_strided_slice %2 {offsets = [0, 0], sizes = [8, 240], strides = [1, 1]} : vector<8x256xf32> to vector<8x240xf32>
    %13 = tpu.concatenate %11, %12 in 1 : vector<8x16xf32>, vector<8x240xf32> -> vector<8x256xf32>
    %14 = vector.extract_strided_slice %0 {offsets = [1, 0], sizes = [1, 256], strides = [1, 1]} : vector<9x256xf32> to vector<1x256xf32>
    %15 = vector.broadcast %14 : vector<1x256xf32> to vector<8x256xf32>
    %16 = arith.mulf %13, %15 : vector<8x256xf32>
    %17 = vector.extract_strided_slice %2 {offsets = [0, 241], sizes = [8, 15], strides = [1, 1]} : vector<8x256xf32> to vector<8x15xf32>
    %18 = vector.extract_strided_slice %2 {offsets = [0, 0], sizes = [8, 241], strides = [1, 1]} : vector<8x256xf32> to vector<8x241xf32>
    %19 = tpu.concatenate %17, %18 in 1 : vector<8x15xf32>, vector<8x241xf32> -> vector<8x256xf32>
    %20 = vector.extract_strided_slice %0 {offsets = [2, 0], sizes = [1, 256], strides = [1, 1]} : vector<9x256xf32> to vector<1x256xf32>
    %21 = vector.broadcast %20 : vector<1x256xf32> to vector<8x256xf32>
    %22 = arith.mulf %19, %21 : vector<8x256xf32>
    %23 = vector.extract_strided_slice %2 {offsets = [0, 255], sizes = [8, 1], strides = [1, 1]} : vector<8x256xf32> to vector<8x1xf32>
    %24 = vector.extract_strided_slice %2 {offsets = [0, 0], sizes = [8, 255], strides = [1, 1]} : vector<8x256xf32> to vector<8x255xf32>
    %25 = tpu.concatenate %23, %24 in 1 : vector<8x1xf32>, vector<8x255xf32> -> vector<8x256xf32>
    %26 = vector.extract_strided_slice %0 {offsets = [3, 0], sizes = [1, 256], strides = [1, 1]} : vector<9x256xf32> to vector<1x256xf32>
    %27 = vector.broadcast %26 : vector<1x256xf32> to vector<8x256xf32>
    %28 = arith.mulf %25, %27 : vector<8x256xf32>
    %29 = vector.extract_strided_slice %2 {offsets = [0, 1], sizes = [8, 255], strides = [1, 1]} : vector<8x256xf32> to vector<8x255xf32>
    %30 = vector.extract_strided_slice %2 {offsets = [0, 0], sizes = [8, 1], strides = [1, 1]} : vector<8x256xf32> to vector<8x1xf32>
    %31 = tpu.concatenate %29, %30 in 1 : vector<8x255xf32>, vector<8x1xf32> -> vector<8x256xf32>
    %32 = vector.extract_strided_slice %0 {offsets = [5, 0], sizes = [1, 256], strides = [1, 1]} : vector<9x256xf32> to vector<1x256xf32>
    %33 = vector.broadcast %32 : vector<1x256xf32> to vector<8x256xf32>
    %34 = arith.mulf %31, %33 : vector<8x256xf32>
    %35 = vector.extract_strided_slice %2 {offsets = [0, 15], sizes = [8, 241], strides = [1, 1]} : vector<8x256xf32> to vector<8x241xf32>
    %36 = vector.extract_strided_slice %2 {offsets = [0, 0], sizes = [8, 15], strides = [1, 1]} : vector<8x256xf32> to vector<8x15xf32>
    %37 = tpu.concatenate %35, %36 in 1 : vector<8x241xf32>, vector<8x15xf32> -> vector<8x256xf32>
    %38 = vector.extract_strided_slice %0 {offsets = [6, 0], sizes = [1, 256], strides = [1, 1]} : vector<9x256xf32> to vector<1x256xf32>
    %39 = vector.broadcast %38 : vector<1x256xf32> to vector<8x256xf32>
    %40 = arith.mulf %37, %39 : vector<8x256xf32>
    %41 = vector.extract_strided_slice %2 {offsets = [0, 16], sizes = [8, 240], strides = [1, 1]} : vector<8x256xf32> to vector<8x240xf32>
    %42 = vector.extract_strided_slice %2 {offsets = [0, 0], sizes = [8, 16], strides = [1, 1]} : vector<8x256xf32> to vector<8x16xf32>
    %43 = tpu.concatenate %41, %42 in 1 : vector<8x240xf32>, vector<8x16xf32> -> vector<8x256xf32>
    %44 = vector.extract_strided_slice %0 {offsets = [7, 0], sizes = [1, 256], strides = [1, 1]} : vector<9x256xf32> to vector<1x256xf32>
    %45 = vector.broadcast %44 : vector<1x256xf32> to vector<8x256xf32>
    %46 = arith.mulf %43, %45 : vector<8x256xf32>
    %47 = vector.extract_strided_slice %2 {offsets = [0, 17], sizes = [8, 239], strides = [1, 1]} : vector<8x256xf32> to vector<8x239xf32>
    %48 = vector.extract_strided_slice %2 {offsets = [0, 0], sizes = [8, 17], strides = [1, 1]} : vector<8x256xf32> to vector<8x17xf32>
    %49 = tpu.concatenate %47, %48 in 1 : vector<8x239xf32>, vector<8x17xf32> -> vector<8x256xf32>
    %50 = vector.extract_strided_slice %0 {offsets = [8, 0], sizes = [1, 256], strides = [1, 1]} : vector<9x256xf32> to vector<1x256xf32>
    %51 = vector.broadcast %50 : vector<1x256xf32> to vector<8x256xf32>
    %52 = arith.mulf %49, %51 : vector<8x256xf32>
    %53 = tpu.concatenate %10, %16, %22, %28, %2, %34, %40, %46, %52 in 0 : vector<8x256xf32>, vector<8x256xf32>, vector<8x256xf32>, vector<8x256xf32>, vector<8x256xf32>, vector<8x256xf32>, vector<8x256xf32>, vector<8x256xf32>, vector<8x256xf32> -> vector<72x256xf32>
    %cst = arith.constant dense<0.000000e+00> : vector<16x256xf32>
    %54 = tpu.matmul %3, %53, %cst {dimension_numbers = #tpu.dot_dimension_numbers<[1], [0], [0], [1], [0, 0, 1, 1], [], []>} : vector<16x72xf32>, vector<72x256xf32>, vector<16x256xf32> -> vector<16x256xf32>
    %55 = vector.broadcast %4 : vector<16x1xf32> to vector<16x256xf32>
    %56 = arith.addf %54, %55 : vector<16x256xf32>
    %cst_8 = arith.constant 0.000000e+00 : f32
    %57 = vector.broadcast %cst_8 : f32 to vector<16x256xf32>
    %58 = arith.cmpf oge, %56, %57 : vector<16x256xf32>
    %cst_9 = arith.constant 1.000000e-01 : f32
    %59 = vector.broadcast %cst_9 : f32 to vector<16x256xf32>
    %60 = arith.mulf %59, %56 : vector<16x256xf32>
    %61 = arith.select %58, %56, %60 : vector<16x256xi1>, vector<16x256xf32>
    %c0_10 = arith.constant 0 : index
    %c0_11 = arith.constant 0 : index
    %62 = vector.load %arg5[%c0_10, %c0_11] : memref<16x8xf32, #tpu.memory_space<vmem>>, vector<16x8xf32>
    %cst_12 = arith.constant dense<0.000000e+00> : vector<16x256xf32>
    %63 = tpu.matmul %62, %2, %cst_12 {dimension_numbers = #tpu.dot_dimension_numbers<[1], [0], [0], [1], [0, 0, 1, 1], [], []>} : vector<16x8xf32>, vector<8x256xf32>, vector<16x256xf32> -> vector<16x256xf32>
    %c0_13 = arith.constant 0 : index
    %c0_14 = arith.constant 0 : index
    %64 = vector.load %arg6[%c0_13, %c0_14] : memref<16x1xf32, #tpu.memory_space<vmem>>, vector<16x1xf32>
    %65 = vector.broadcast %64 : vector<16x1xf32> to vector<16x256xf32>
    %66 = arith.addf %63, %65 : vector<16x256xf32>
    %c0_15 = arith.constant 0 : index
    %c0_16 = arith.constant 0 : index
    %67 = vector.load %arg7[%c0_15, %c0_16] : memref<16x144xf32, #tpu.memory_space<vmem>>, vector<16x144xf32>
    %c0_17 = arith.constant 0 : index
    %c0_18 = arith.constant 0 : index
    %68 = vector.load %arg8[%c0_17, %c0_18] : memref<16x1xf32, #tpu.memory_space<vmem>>, vector<16x1xf32>
    %69 = vector.extract_strided_slice %61 {offsets = [0, 239], sizes = [16, 17], strides = [1, 1]} : vector<16x256xf32> to vector<16x17xf32>
    %70 = vector.extract_strided_slice %61 {offsets = [0, 0], sizes = [16, 239], strides = [1, 1]} : vector<16x256xf32> to vector<16x239xf32>
    %71 = tpu.concatenate %69, %70 in 1 : vector<16x17xf32>, vector<16x239xf32> -> vector<16x256xf32>
    %72 = vector.extract_strided_slice %0 {offsets = [0, 0], sizes = [1, 256], strides = [1, 1]} : vector<9x256xf32> to vector<1x256xf32>
    %73 = vector.broadcast %72 : vector<1x256xf32> to vector<16x256xf32>
    %74 = arith.mulf %71, %73 : vector<16x256xf32>
    %75 = vector.extract_strided_slice %61 {offsets = [0, 240], sizes = [16, 16], strides = [1, 1]} : vector<16x256xf32> to vector<16x16xf32>
    %76 = vector.extract_strided_slice %61 {offsets = [0, 0], sizes = [16, 240], strides = [1, 1]} : vector<16x256xf32> to vector<16x240xf32>
    %77 = tpu.concatenate %75, %76 in 1 : vector<16x16xf32>, vector<16x240xf32> -> vector<16x256xf32>
    %78 = vector.extract_strided_slice %0 {offsets = [1, 0], sizes = [1, 256], strides = [1, 1]} : vector<9x256xf32> to vector<1x256xf32>
    %79 = vector.broadcast %78 : vector<1x256xf32> to vector<16x256xf32>
    %80 = arith.mulf %77, %79 : vector<16x256xf32>
    %81 = vector.extract_strided_slice %61 {offsets = [0, 241], sizes = [16, 15], strides = [1, 1]} : vector<16x256xf32> to vector<16x15xf32>
    %82 = vector.extract_strided_slice %61 {offsets = [0, 0], sizes = [16, 241], strides = [1, 1]} : vector<16x256xf32> to vector<16x241xf32>
    %83 = tpu.concatenate %81, %82 in 1 : vector<16x15xf32>, vector<16x241xf32> -> vector<16x256xf32>
    %84 = vector.extract_strided_slice %0 {offsets = [2, 0], sizes = [1, 256], strides = [1, 1]} : vector<9x256xf32> to vector<1x256xf32>
    %85 = vector.broadcast %84 : vector<1x256xf32> to vector<16x256xf32>
    %86 = arith.mulf %83, %85 : vector<16x256xf32>
    %87 = vector.extract_strided_slice %61 {offsets = [0, 255], sizes = [16, 1], strides = [1, 1]} : vector<16x256xf32> to vector<16x1xf32>
    %88 = vector.extract_strided_slice %61 {offsets = [0, 0], sizes = [16, 255], strides = [1, 1]} : vector<16x256xf32> to vector<16x255xf32>
    %89 = tpu.concatenate %87, %88 in 1 : vector<16x1xf32>, vector<16x255xf32> -> vector<16x256xf32>
    %90 = vector.extract_strided_slice %0 {offsets = [3, 0], sizes = [1, 256], strides = [1, 1]} : vector<9x256xf32> to vector<1x256xf32>
    %91 = vector.broadcast %90 : vector<1x256xf32> to vector<16x256xf32>
    %92 = arith.mulf %89, %91 : vector<16x256xf32>
    %93 = vector.extract_strided_slice %61 {offsets = [0, 1], sizes = [16, 255], strides = [1, 1]} : vector<16x256xf32> to vector<16x255xf32>
    %94 = vector.extract_strided_slice %61 {offsets = [0, 0], sizes = [16, 1], strides = [1, 1]} : vector<16x256xf32> to vector<16x1xf32>
    %95 = tpu.concatenate %93, %94 in 1 : vector<16x255xf32>, vector<16x1xf32> -> vector<16x256xf32>
    %96 = vector.extract_strided_slice %0 {offsets = [5, 0], sizes = [1, 256], strides = [1, 1]} : vector<9x256xf32> to vector<1x256xf32>
    %97 = vector.broadcast %96 : vector<1x256xf32> to vector<16x256xf32>
    %98 = arith.mulf %95, %97 : vector<16x256xf32>
    %99 = vector.extract_strided_slice %61 {offsets = [0, 15], sizes = [16, 241], strides = [1, 1]} : vector<16x256xf32> to vector<16x241xf32>
    %100 = vector.extract_strided_slice %61 {offsets = [0, 0], sizes = [16, 15], strides = [1, 1]} : vector<16x256xf32> to vector<16x15xf32>
    %101 = tpu.concatenate %99, %100 in 1 : vector<16x241xf32>, vector<16x15xf32> -> vector<16x256xf32>
    %102 = vector.extract_strided_slice %0 {offsets = [6, 0], sizes = [1, 256], strides = [1, 1]} : vector<9x256xf32> to vector<1x256xf32>
    %103 = vector.broadcast %102 : vector<1x256xf32> to vector<16x256xf32>
    %104 = arith.mulf %101, %103 : vector<16x256xf32>
    %105 = vector.extract_strided_slice %61 {offsets = [0, 16], sizes = [16, 240], strides = [1, 1]} : vector<16x256xf32> to vector<16x240xf32>
    %106 = vector.extract_strided_slice %61 {offsets = [0, 0], sizes = [16, 16], strides = [1, 1]} : vector<16x256xf32> to vector<16x16xf32>
    %107 = tpu.concatenate %105, %106 in 1 : vector<16x240xf32>, vector<16x16xf32> -> vector<16x256xf32>
    %108 = vector.extract_strided_slice %0 {offsets = [7, 0], sizes = [1, 256], strides = [1, 1]} : vector<9x256xf32> to vector<1x256xf32>
    %109 = vector.broadcast %108 : vector<1x256xf32> to vector<16x256xf32>
    %110 = arith.mulf %107, %109 : vector<16x256xf32>
    %111 = vector.extract_strided_slice %61 {offsets = [0, 17], sizes = [16, 239], strides = [1, 1]} : vector<16x256xf32> to vector<16x239xf32>
    %112 = vector.extract_strided_slice %61 {offsets = [0, 0], sizes = [16, 17], strides = [1, 1]} : vector<16x256xf32> to vector<16x17xf32>
    %113 = tpu.concatenate %111, %112 in 1 : vector<16x239xf32>, vector<16x17xf32> -> vector<16x256xf32>
    %114 = vector.extract_strided_slice %0 {offsets = [8, 0], sizes = [1, 256], strides = [1, 1]} : vector<9x256xf32> to vector<1x256xf32>
    %115 = vector.broadcast %114 : vector<1x256xf32> to vector<16x256xf32>
    %116 = arith.mulf %113, %115 : vector<16x256xf32>
    %117 = tpu.concatenate %74, %80, %86, %92, %61, %98, %104, %110, %116 in 0 : vector<16x256xf32>, vector<16x256xf32>, vector<16x256xf32>, vector<16x256xf32>, vector<16x256xf32>, vector<16x256xf32>, vector<16x256xf32>, vector<16x256xf32>, vector<16x256xf32> -> vector<144x256xf32>
    %cst_19 = arith.constant dense<0.000000e+00> : vector<16x256xf32>
    %118 = tpu.matmul %67, %117, %cst_19 {dimension_numbers = #tpu.dot_dimension_numbers<[1], [0], [0], [1], [0, 0, 1, 1], [], []>} : vector<16x144xf32>, vector<144x256xf32>, vector<16x256xf32> -> vector<16x256xf32>
    %119 = vector.broadcast %68 : vector<16x1xf32> to vector<16x256xf32>
    %120 = arith.addf %118, %119 : vector<16x256xf32>
    %121 = arith.addf %120, %66 : vector<16x256xf32>
    %cst_20 = arith.constant 0.000000e+00 : f32
    %122 = vector.broadcast %cst_20 : f32 to vector<16x256xf32>
    %123 = arith.cmpf oge, %121, %122 : vector<16x256xf32>
    %cst_21 = arith.constant 1.000000e-01 : f32
    %124 = vector.broadcast %cst_21 : f32 to vector<16x256xf32>
    %125 = arith.mulf %124, %121 : vector<16x256xf32>
    %126 = arith.select %123, %121, %125 : vector<16x256xi1>, vector<16x256xf32>
    %c0_i32 = arith.constant 0 : i32
    %c19_i32 = arith.constant 19 : i32
    %127 = arith.addi %c0_i32, %c19_i32 : i32
    %c1_i32 = arith.constant 1 : i32
    %128 = scf.for %arg17 = %c0_i32 to %127 step %c1_i32 iter_args(%arg18 = %126) -> (vector<16x256xf32>)  : i32 {
      %144 = arith.index_cast %arg17 : i32 to index
      %c0_35 = arith.constant 0 : index
      %c0_36 = arith.constant 0 : index
      %145 = vector.load %arg9[%144, %c0_35, %c0_36] : memref<19x16x144xf32, #tpu.memory_space<vmem>>, vector<1x16x144xf32>
      %146 = vector.shape_cast %145 : vector<1x16x144xf32> to vector<16x144xf32>
      %147 = arith.index_cast %arg17 : i32 to index
      %c0_37 = arith.constant 0 : index
      %c0_38 = arith.constant 0 : index
      %148 = vector.load %arg10[%147, %c0_37, %c0_38] : memref<19x16x1xf32, #tpu.memory_space<vmem>>, vector<1x16x1xf32>
      %149 = vector.shape_cast %148 : vector<1x16x1xf32> to vector<16x1xf32>
      %150 = vector.extract_strided_slice %arg18 {offsets = [0, 239], sizes = [16, 17], strides = [1, 1]} : vector<16x256xf32> to vector<16x17xf32>
      %151 = vector.extract_strided_slice %arg18 {offsets = [0, 0], sizes = [16, 239], strides = [1, 1]} : vector<16x256xf32> to vector<16x239xf32>
      %152 = tpu.concatenate %150, %151 in 1 : vector<16x17xf32>, vector<16x239xf32> -> vector<16x256xf32>
      %153 = vector.extract_strided_slice %0 {offsets = [0, 0], sizes = [1, 256], strides = [1, 1]} : vector<9x256xf32> to vector<1x256xf32>
      %154 = vector.broadcast %153 : vector<1x256xf32> to vector<16x256xf32>
      %155 = arith.mulf %152, %154 : vector<16x256xf32>
      %156 = vector.extract_strided_slice %arg18 {offsets = [0, 240], sizes = [16, 16], strides = [1, 1]} : vector<16x256xf32> to vector<16x16xf32>
      %157 = vector.extract_strided_slice %arg18 {offsets = [0, 0], sizes = [16, 240], strides = [1, 1]} : vector<16x256xf32> to vector<16x240xf32>
      %158 = tpu.concatenate %156, %157 in 1 : vector<16x16xf32>, vector<16x240xf32> -> vector<16x256xf32>
      %159 = vector.extract_strided_slice %0 {offsets = [1, 0], sizes = [1, 256], strides = [1, 1]} : vector<9x256xf32> to vector<1x256xf32>
      %160 = vector.broadcast %159 : vector<1x256xf32> to vector<16x256xf32>
      %161 = arith.mulf %158, %160 : vector<16x256xf32>
      %162 = vector.extract_strided_slice %arg18 {offsets = [0, 241], sizes = [16, 15], strides = [1, 1]} : vector<16x256xf32> to vector<16x15xf32>
      %163 = vector.extract_strided_slice %arg18 {offsets = [0, 0], sizes = [16, 241], strides = [1, 1]} : vector<16x256xf32> to vector<16x241xf32>
      %164 = tpu.concatenate %162, %163 in 1 : vector<16x15xf32>, vector<16x241xf32> -> vector<16x256xf32>
      %165 = vector.extract_strided_slice %0 {offsets = [2, 0], sizes = [1, 256], strides = [1, 1]} : vector<9x256xf32> to vector<1x256xf32>
      %166 = vector.broadcast %165 : vector<1x256xf32> to vector<16x256xf32>
      %167 = arith.mulf %164, %166 : vector<16x256xf32>
      %168 = vector.extract_strided_slice %arg18 {offsets = [0, 255], sizes = [16, 1], strides = [1, 1]} : vector<16x256xf32> to vector<16x1xf32>
      %169 = vector.extract_strided_slice %arg18 {offsets = [0, 0], sizes = [16, 255], strides = [1, 1]} : vector<16x256xf32> to vector<16x255xf32>
      %170 = tpu.concatenate %168, %169 in 1 : vector<16x1xf32>, vector<16x255xf32> -> vector<16x256xf32>
      %171 = vector.extract_strided_slice %0 {offsets = [3, 0], sizes = [1, 256], strides = [1, 1]} : vector<9x256xf32> to vector<1x256xf32>
      %172 = vector.broadcast %171 : vector<1x256xf32> to vector<16x256xf32>
      %173 = arith.mulf %170, %172 : vector<16x256xf32>
      %174 = vector.extract_strided_slice %arg18 {offsets = [0, 1], sizes = [16, 255], strides = [1, 1]} : vector<16x256xf32> to vector<16x255xf32>
      %175 = vector.extract_strided_slice %arg18 {offsets = [0, 0], sizes = [16, 1], strides = [1, 1]} : vector<16x256xf32> to vector<16x1xf32>
      %176 = tpu.concatenate %174, %175 in 1 : vector<16x255xf32>, vector<16x1xf32> -> vector<16x256xf32>
      %177 = vector.extract_strided_slice %0 {offsets = [5, 0], sizes = [1, 256], strides = [1, 1]} : vector<9x256xf32> to vector<1x256xf32>
      %178 = vector.broadcast %177 : vector<1x256xf32> to vector<16x256xf32>
      %179 = arith.mulf %176, %178 : vector<16x256xf32>
      %180 = vector.extract_strided_slice %arg18 {offsets = [0, 15], sizes = [16, 241], strides = [1, 1]} : vector<16x256xf32> to vector<16x241xf32>
      %181 = vector.extract_strided_slice %arg18 {offsets = [0, 0], sizes = [16, 15], strides = [1, 1]} : vector<16x256xf32> to vector<16x15xf32>
      %182 = tpu.concatenate %180, %181 in 1 : vector<16x241xf32>, vector<16x15xf32> -> vector<16x256xf32>
      %183 = vector.extract_strided_slice %0 {offsets = [6, 0], sizes = [1, 256], strides = [1, 1]} : vector<9x256xf32> to vector<1x256xf32>
      %184 = vector.broadcast %183 : vector<1x256xf32> to vector<16x256xf32>
      %185 = arith.mulf %182, %184 : vector<16x256xf32>
      %186 = vector.extract_strided_slice %arg18 {offsets = [0, 16], sizes = [16, 240], strides = [1, 1]} : vector<16x256xf32> to vector<16x240xf32>
      %187 = vector.extract_strided_slice %arg18 {offsets = [0, 0], sizes = [16, 16], strides = [1, 1]} : vector<16x256xf32> to vector<16x16xf32>
      %188 = tpu.concatenate %186, %187 in 1 : vector<16x240xf32>, vector<16x16xf32> -> vector<16x256xf32>
      %189 = vector.extract_strided_slice %0 {offsets = [7, 0], sizes = [1, 256], strides = [1, 1]} : vector<9x256xf32> to vector<1x256xf32>
      %190 = vector.broadcast %189 : vector<1x256xf32> to vector<16x256xf32>
      %191 = arith.mulf %188, %190 : vector<16x256xf32>
      %192 = vector.extract_strided_slice %arg18 {offsets = [0, 17], sizes = [16, 239], strides = [1, 1]} : vector<16x256xf32> to vector<16x239xf32>
      %193 = vector.extract_strided_slice %arg18 {offsets = [0, 0], sizes = [16, 17], strides = [1, 1]} : vector<16x256xf32> to vector<16x17xf32>
      %194 = tpu.concatenate %192, %193 in 1 : vector<16x239xf32>, vector<16x17xf32> -> vector<16x256xf32>
      %195 = vector.extract_strided_slice %0 {offsets = [8, 0], sizes = [1, 256], strides = [1, 1]} : vector<9x256xf32> to vector<1x256xf32>
      %196 = vector.broadcast %195 : vector<1x256xf32> to vector<16x256xf32>
      %197 = arith.mulf %194, %196 : vector<16x256xf32>
      %198 = tpu.concatenate %155, %161, %167, %173, %arg18, %179, %185, %191, %197 in 0 : vector<16x256xf32>, vector<16x256xf32>, vector<16x256xf32>, vector<16x256xf32>, vector<16x256xf32>, vector<16x256xf32>, vector<16x256xf32>, vector<16x256xf32>, vector<16x256xf32> -> vector<144x256xf32>
      %cst_39 = arith.constant dense<0.000000e+00> : vector<16x256xf32>
      %199 = tpu.matmul %146, %198, %cst_39 {dimension_numbers = #tpu.dot_dimension_numbers<[1], [0], [0], [1], [0, 0, 1, 1], [], []>} : vector<16x144xf32>, vector<144x256xf32>, vector<16x256xf32> -> vector<16x256xf32>
      %200 = vector.broadcast %149 : vector<16x1xf32> to vector<16x256xf32>
      %201 = arith.addf %199, %200 : vector<16x256xf32>
      %cst_40 = arith.constant 0.000000e+00 : f32
      %202 = vector.broadcast %cst_40 : f32 to vector<16x256xf32>
      %203 = arith.cmpf oge, %201, %202 : vector<16x256xf32>
      %cst_41 = arith.constant 1.000000e-01 : f32
      %204 = vector.broadcast %cst_41 : f32 to vector<16x256xf32>
      %205 = arith.mulf %204, %201 : vector<16x256xf32>
      %206 = arith.select %203, %201, %205 : vector<16x256xi1>, vector<16x256xf32>
      %207 = arith.index_cast %arg17 : i32 to index
      %c0_42 = arith.constant 0 : index
      %c0_43 = arith.constant 0 : index
      %208 = vector.load %arg11[%207, %c0_42, %c0_43] : memref<19x16x144xf32, #tpu.memory_space<vmem>>, vector<1x16x144xf32>
      %209 = vector.shape_cast %208 : vector<1x16x144xf32> to vector<16x144xf32>
      %210 = arith.index_cast %arg17 : i32 to index
      %c0_44 = arith.constant 0 : index
      %c0_45 = arith.constant 0 : index
      %211 = vector.load %arg12[%210, %c0_44, %c0_45] : memref<19x16x1xf32, #tpu.memory_space<vmem>>, vector<1x16x1xf32>
      %212 = vector.shape_cast %211 : vector<1x16x1xf32> to vector<16x1xf32>
      %213 = vector.extract_strided_slice %206 {offsets = [0, 239], sizes = [16, 17], strides = [1, 1]} : vector<16x256xf32> to vector<16x17xf32>
      %214 = vector.extract_strided_slice %206 {offsets = [0, 0], sizes = [16, 239], strides = [1, 1]} : vector<16x256xf32> to vector<16x239xf32>
      %215 = tpu.concatenate %213, %214 in 1 : vector<16x17xf32>, vector<16x239xf32> -> vector<16x256xf32>
      %216 = vector.extract_strided_slice %0 {offsets = [0, 0], sizes = [1, 256], strides = [1, 1]} : vector<9x256xf32> to vector<1x256xf32>
      %217 = vector.broadcast %216 : vector<1x256xf32> to vector<16x256xf32>
      %218 = arith.mulf %215, %217 : vector<16x256xf32>
      %219 = vector.extract_strided_slice %206 {offsets = [0, 240], sizes = [16, 16], strides = [1, 1]} : vector<16x256xf32> to vector<16x16xf32>
      %220 = vector.extract_strided_slice %206 {offsets = [0, 0], sizes = [16, 240], strides = [1, 1]} : vector<16x256xf32> to vector<16x240xf32>
      %221 = tpu.concatenate %219, %220 in 1 : vector<16x16xf32>, vector<16x240xf32> -> vector<16x256xf32>
      %222 = vector.extract_strided_slice %0 {offsets = [1, 0], sizes = [1, 256], strides = [1, 1]} : vector<9x256xf32> to vector<1x256xf32>
      %223 = vector.broadcast %222 : vector<1x256xf32> to vector<16x256xf32>
      %224 = arith.mulf %221, %223 : vector<16x256xf32>
      %225 = vector.extract_strided_slice %206 {offsets = [0, 241], sizes = [16, 15], strides = [1, 1]} : vector<16x256xf32> to vector<16x15xf32>
      %226 = vector.extract_strided_slice %206 {offsets = [0, 0], sizes = [16, 241], strides = [1, 1]} : vector<16x256xf32> to vector<16x241xf32>
      %227 = tpu.concatenate %225, %226 in 1 : vector<16x15xf32>, vector<16x241xf32> -> vector<16x256xf32>
      %228 = vector.extract_strided_slice %0 {offsets = [2, 0], sizes = [1, 256], strides = [1, 1]} : vector<9x256xf32> to vector<1x256xf32>
      %229 = vector.broadcast %228 : vector<1x256xf32> to vector<16x256xf32>
      %230 = arith.mulf %227, %229 : vector<16x256xf32>
      %231 = vector.extract_strided_slice %206 {offsets = [0, 255], sizes = [16, 1], strides = [1, 1]} : vector<16x256xf32> to vector<16x1xf32>
      %232 = vector.extract_strided_slice %206 {offsets = [0, 0], sizes = [16, 255], strides = [1, 1]} : vector<16x256xf32> to vector<16x255xf32>
      %233 = tpu.concatenate %231, %232 in 1 : vector<16x1xf32>, vector<16x255xf32> -> vector<16x256xf32>
      %234 = vector.extract_strided_slice %0 {offsets = [3, 0], sizes = [1, 256], strides = [1, 1]} : vector<9x256xf32> to vector<1x256xf32>
      %235 = vector.broadcast %234 : vector<1x256xf32> to vector<16x256xf32>
      %236 = arith.mulf %233, %235 : vector<16x256xf32>
      %237 = vector.extract_strided_slice %206 {offsets = [0, 1], sizes = [16, 255], strides = [1, 1]} : vector<16x256xf32> to vector<16x255xf32>
      %238 = vector.extract_strided_slice %206 {offsets = [0, 0], sizes = [16, 1], strides = [1, 1]} : vector<16x256xf32> to vector<16x1xf32>
      %239 = tpu.concatenate %237, %238 in 1 : vector<16x255xf32>, vector<16x1xf32> -> vector<16x256xf32>
      %240 = vector.extract_strided_slice %0 {offsets = [5, 0], sizes = [1, 256], strides = [1, 1]} : vector<9x256xf32> to vector<1x256xf32>
      %241 = vector.broadcast %240 : vector<1x256xf32> to vector<16x256xf32>
      %242 = arith.mulf %239, %241 : vector<16x256xf32>
      %243 = vector.extract_strided_slice %206 {offsets = [0, 15], sizes = [16, 241], strides = [1, 1]} : vector<16x256xf32> to vector<16x241xf32>
      %244 = vector.extract_strided_slice %206 {offsets = [0, 0], sizes = [16, 15], strides = [1, 1]} : vector<16x256xf32> to vector<16x15xf32>
      %245 = tpu.concatenate %243, %244 in 1 : vector<16x241xf32>, vector<16x15xf32> -> vector<16x256xf32>
      %246 = vector.extract_strided_slice %0 {offsets = [6, 0], sizes = [1, 256], strides = [1, 1]} : vector<9x256xf32> to vector<1x256xf32>
      %247 = vector.broadcast %246 : vector<1x256xf32> to vector<16x256xf32>
      %248 = arith.mulf %245, %247 : vector<16x256xf32>
      %249 = vector.extract_strided_slice %206 {offsets = [0, 16], sizes = [16, 240], strides = [1, 1]} : vector<16x256xf32> to vector<16x240xf32>
      %250 = vector.extract_strided_slice %206 {offsets = [0, 0], sizes = [16, 16], strides = [1, 1]} : vector<16x256xf32> to vector<16x16xf32>
      %251 = tpu.concatenate %249, %250 in 1 : vector<16x240xf32>, vector<16x16xf32> -> vector<16x256xf32>
      %252 = vector.extract_strided_slice %0 {offsets = [7, 0], sizes = [1, 256], strides = [1, 1]} : vector<9x256xf32> to vector<1x256xf32>
      %253 = vector.broadcast %252 : vector<1x256xf32> to vector<16x256xf32>
      %254 = arith.mulf %251, %253 : vector<16x256xf32>
      %255 = vector.extract_strided_slice %206 {offsets = [0, 17], sizes = [16, 239], strides = [1, 1]} : vector<16x256xf32> to vector<16x239xf32>
      %256 = vector.extract_strided_slice %206 {offsets = [0, 0], sizes = [16, 17], strides = [1, 1]} : vector<16x256xf32> to vector<16x17xf32>
      %257 = tpu.concatenate %255, %256 in 1 : vector<16x239xf32>, vector<16x17xf32> -> vector<16x256xf32>
      %258 = vector.extract_strided_slice %0 {offsets = [8, 0], sizes = [1, 256], strides = [1, 1]} : vector<9x256xf32> to vector<1x256xf32>
      %259 = vector.broadcast %258 : vector<1x256xf32> to vector<16x256xf32>
      %260 = arith.mulf %257, %259 : vector<16x256xf32>
      %261 = tpu.concatenate %218, %224, %230, %236, %206, %242, %248, %254, %260 in 0 : vector<16x256xf32>, vector<16x256xf32>, vector<16x256xf32>, vector<16x256xf32>, vector<16x256xf32>, vector<16x256xf32>, vector<16x256xf32>, vector<16x256xf32>, vector<16x256xf32> -> vector<144x256xf32>
      %cst_46 = arith.constant dense<0.000000e+00> : vector<16x256xf32>
      %262 = tpu.matmul %209, %261, %cst_46 {dimension_numbers = #tpu.dot_dimension_numbers<[1], [0], [0], [1], [0, 0, 1, 1], [], []>} : vector<16x144xf32>, vector<144x256xf32>, vector<16x256xf32> -> vector<16x256xf32>
      %263 = vector.broadcast %212 : vector<16x1xf32> to vector<16x256xf32>
      %264 = arith.addf %262, %263 : vector<16x256xf32>
      %265 = arith.addf %264, %arg18 : vector<16x256xf32>
      %cst_47 = arith.constant 0.000000e+00 : f32
      %266 = vector.broadcast %cst_47 : f32 to vector<16x256xf32>
      %267 = arith.cmpf oge, %265, %266 : vector<16x256xf32>
      %cst_48 = arith.constant 1.000000e-01 : f32
      %268 = vector.broadcast %cst_48 : f32 to vector<16x256xf32>
      %269 = arith.mulf %268, %265 : vector<16x256xf32>
      %270 = arith.select %267, %265, %269 : vector<16x256xi1>, vector<16x256xf32>
      scf.yield %270 : vector<16x256xf32>
    }
    %c19_i32_22 = arith.constant 19 : i32
    %c0_23 = arith.constant 0 : index
    %c0_24 = arith.constant 0 : index
    %129 = vector.load %arg13[%c0_23, %c0_24] : memref<1x16xf32, #tpu.memory_space<vmem>>, vector<1x16xf32>
    %cst_25 = arith.constant dense<0.000000e+00> : vector<1x256xf32>
    %130 = tpu.matmul %129, %128, %cst_25 {dimension_numbers = #tpu.dot_dimension_numbers<[1], [0], [0], [1], [0, 0, 1, 1], [], []>} : vector<1x16xf32>, vector<16x256xf32>, vector<1x256xf32> -> vector<1x256xf32>
    %c0_26 = arith.constant 0 : index
    %c0_27 = arith.constant 0 : index
    %131 = vector.load %arg14[%c0_26, %c0_27] : memref<1x1xf32, #tpu.memory_space<vmem>>, vector<1x1xf32>
    %132 = vector.broadcast %131 : vector<1x1xf32> to vector<1x256xf32>
    %133 = arith.addf %130, %132 : vector<1x256xf32>
    %c0_28 = arith.constant 0 : index
    %c0_29 = arith.constant 0 : index
    %134 = vector.load %arg15[%c0_28, %c0_29] : memref<256x768xf32, #tpu.memory_space<vmem>>, vector<256x768xf32>
    %cst_30 = arith.constant dense<0.000000e+00> : vector<1x768xf32>
    %135 = tpu.matmul %133, %134, %cst_30 {dimension_numbers = #tpu.dot_dimension_numbers<[1], [0], [0], [1], [0, 0, 1, 1], [], []>} : vector<1x256xf32>, vector<256x768xf32>, vector<1x768xf32> -> vector<1x768xf32>
    %136 = arith.negf %135 : vector<1x768xf32>
    %137 = math.exp %136 : vector<1x768xf32>
    %cst_31 = arith.constant 1.000000e+00 : f32
    %138 = vector.broadcast %cst_31 : f32 to vector<1x768xf32>
    %139 = arith.addf %138, %137 : vector<1x768xf32>
    %140 = arith.divf %138, %139 : vector<1x768xf32>
    %c0_32 = arith.constant 0 : index
    %c0_33 = arith.constant 0 : index
    %c0_34 = arith.constant 0 : index
    %141 = vector.load %arg16[%c0_32, %c0_33, %c0_34] : memref<1x1x768xf32, #tpu.memory_space<vmem>>, vector<1x1x768xf32>
    %142 = vector.shape_cast %141 : vector<1x1x768xf32> to vector<1x768xf32>
    %143 = vector.shape_cast %140 : vector<1x768xf32> to vector<1x1x768xf32>
    tpu.vector_store %arg16[%c0_32, %c0_33, %c0_34], %143 {strides = array<i32>} : memref<1x1x768xf32, #tpu.memory_space<vmem>>, vector<1x1x768xf32>,
    return
  }
  func.func @transform_0(%arg0: i32) -> (i32, i32, i32) {
    %c0_i32 = arith.constant 0 : i32
    %c0_i32_0 = arith.constant 0 : i32
    %c0_i32_1 = arith.constant 0 : i32
    return %arg0, %c0_i32, %c0_i32_0 : i32, i32, i32
  }
  func.func @transform_1(%arg0: i32) -> (i32, i32) {
    %c0_i32 = arith.constant 0 : i32
    %c0_i32_0 = arith.constant 0 : i32
    %c0_i32_1 = arith.constant 0 : i32
    return %c0_i32, %c0_i32_0 : i32, i32
  }
  func.func @transform_2(%arg0: i32) -> (i32, i32) {
    %c0_i32 = arith.constant 0 : i32
    %c0_i32_0 = arith.constant 0 : i32
    %c0_i32_1 = arith.constant 0 : i32
    return %c0_i32, %c0_i32_0 : i32, i32
  }
  func.func @transform_3(%arg0: i32) -> (i32, i32) {
    %c0_i32 = arith.constant 0 : i32
    %c0_i32_0 = arith.constant 0 : i32
    %c0_i32_1 = arith.constant 0 : i32
    return %c0_i32, %c0_i32_0 : i32, i32
  }
  func.func @transform_4(%arg0: i32) -> (i32, i32) {
    %c0_i32 = arith.constant 0 : i32
    %c0_i32_0 = arith.constant 0 : i32
    %c0_i32_1 = arith.constant 0 : i32
    return %c0_i32, %c0_i32_0 : i32, i32
  }
  func.func @transform_5(%arg0: i32) -> (i32, i32) {
    %c0_i32 = arith.constant 0 : i32
    %c0_i32_0 = arith.constant 0 : i32
    %c0_i32_1 = arith.constant 0 : i32
    return %c0_i32, %c0_i32_0 : i32, i32
  }
  func.func @transform_6(%arg0: i32) -> (i32, i32) {
    %c0_i32 = arith.constant 0 : i32
    %c0_i32_0 = arith.constant 0 : i32
    %c0_i32_1 = arith.constant 0 : i32
    return %c0_i32, %c0_i32_0 : i32, i32
  }
  func.func @transform_7(%arg0: i32) -> (i32, i32) {
    %c0_i32 = arith.constant 0 : i32
    %c0_i32_0 = arith.constant 0 : i32
    %c0_i32_1 = arith.constant 0 : i32
    return %c0_i32, %c0_i32_0 : i32, i32
  }
  func.func @transform_8(%arg0: i32) -> (i32, i32, i32) {
    %c0_i32 = arith.constant 0 : i32
    %c0_i32_0 = arith.constant 0 : i32
    %c0_i32_1 = arith.constant 0 : i32
    %c0_i32_2 = arith.constant 0 : i32
    return %c0_i32, %c0_i32_0, %c0_i32_1 : i32, i32, i32
  }
  func.func @transform_9(%arg0: i32) -> (i32, i32, i32) {
    %c0_i32 = arith.constant 0 : i32
    %c0_i32_0 = arith.constant 0 : i32
    %c0_i32_1 = arith.constant 0 : i32
    %c0_i32_2 = arith.constant 0 : i32
    return %c0_i32, %c0_i32_0, %c0_i32_1 : i32, i32, i32
  }
  func.func @transform_10(%arg0: i32) -> (i32, i32, i32) {
    %c0_i32 = arith.constant 0 : i32
    %c0_i32_0 = arith.constant 0 : i32
    %c0_i32_1 = arith.constant 0 : i32
    %c0_i32_2 = arith.constant 0 : i32
    return %c0_i32, %c0_i32_0, %c0_i32_1 : i32, i32, i32
  }
  func.func @transform_11(%arg0: i32) -> (i32, i32, i32) {
    %c0_i32 = arith.constant 0 : i32
    %c0_i32_0 = arith.constant 0 : i32
    %c0_i32_1 = arith.constant 0 : i32
    %c0_i32_2 = arith.constant 0 : i32
    return %c0_i32, %c0_i32_0, %c0_i32_1 : i32, i32, i32
  }
  func.func @transform_12(%arg0: i32) -> (i32, i32) {
    %c0_i32 = arith.constant 0 : i32
    %c0_i32_0 = arith.constant 0 : i32
    %c0_i32_1 = arith.constant 0 : i32
    return %c0_i32, %c0_i32_0 : i32, i32
  }
  func.func @transform_13(%arg0: i32) -> (i32, i32) {
    %c0_i32 = arith.constant 0 : i32
    %c0_i32_0 = arith.constant 0 : i32
    %c0_i32_1 = arith.constant 0 : i32
    return %c0_i32, %c0_i32_0 : i32, i32
  }
  func.func @transform_14(%arg0: i32) -> (i32, i32) {
    %c0_i32 = arith.constant 0 : i32
    %c0_i32_0 = arith.constant 0 : i32
    %c0_i32_1 = arith.constant 0 : i32
    return %c0_i32, %c0_i32_0 : i32, i32
  }
  func.func @transform_15(%arg0: i32) -> (i32, i32, i32) {
    %c0_i32 = arith.constant 0 : i32
    %c0_i32_0 = arith.constant 0 : i32
    %c0_i32_1 = arith.constant 0 : i32
    return %arg0, %c0_i32, %c0_i32_0 : i32, i32, i32
  }
}

</mosaic_0001>

<llo_original>
// kernel: heatmap_model_forward.1
$region0: #{heatmap_model_forward.1}
  #allocation0 [shape = 'u32[]', space=smem, size = 0x4, offset = 0x4, fixed_abs, tag = 'smem constant byte address 0x4 - core index']
  #allocation1 [shape = 'u32[144,128]{1,0:T(1,128)}', space=vmem, size = 0x12000, scoped, tag = 'internal scratch']
  #allocation2 [shape = 'f32[1,1]{1,0:T(1,128)S(1)}', space=vmem, size = 0x200, scoped, tag = 'scoped memory for heatmap_model_forward.1']
  %s0 = inlined_call_operand.vmem [shape: f32[2,8,256], index: 0, kind: input, shape index: {}]
  %s1 = inlined_call_operand.vmem [shape: f32[9,256], index: 1, kind: input, shape index: {}]
  %s2 = inlined_call_operand.vmem [shape: f32[16,72], index: 2, kind: input, shape index: {}]
  %s3 = inlined_call_operand.vmem [shape: f32[16,1], index: 3, kind: input, shape index: {}]
  %s4 = inlined_call_operand.vmem [shape: f32[16,8], index: 4, kind: input, shape index: {}]
  %s5 = inlined_call_operand.vmem [shape: f32[16,1], index: 5, kind: input, shape index: {}]
  %s6 = inlined_call_operand.vmem [shape: f32[16,144], index: 6, kind: input, shape index: {}]
  %s7 = inlined_call_operand.vmem [shape: f32[16,1], index: 7, kind: input, shape index: {}]
  %s8 = inlined_call_operand.vmem [shape: f32[19,16,144], index: 8, kind: input, shape index: {}]
  %s9 = inlined_call_operand.vmem [shape: f32[19,16,1], index: 9, kind: input, shape index: {}]
  %s10 = inlined_call_operand.hbm [shape: f32[19,16,144], index: 10, kind: input, shape index: {}]
  %s11 = inlined_call_operand.vmem [shape: f32[19,16,1], index: 11, kind: input, shape index: {}]
  %s12 = inlined_call_operand.vmem [shape: f32[1,16], index: 12, kind: input, shape index: {}]
  %s13 = inlined_call_operand.<no memory space> [shape: f32[1,1], index: 13, kind: input, shape index: {}]
  %s14 = inlined_call_operand.hbm [shape: f32[256,768], index: 14, kind: input, shape index: {}]
  %s15 = inlined_call_operand.vmem [shape: f32[2,1,768], index: 15, kind: output, shape index: {}]
  %s16 = sld [smem:[#allocation0]]
  $region108: #{heatmap_model_forward.1} parent=0
    _
  %s18 = ssub.s32 1, %s16
  %s19 = scalar_select 0, %s18, %s16
  %v20 = vstv %s13
  %21 = vst [vmem:[#allocation2] sm:$0x1] %v20
  $region1: #{heatmap_model_forward.1} parent=0
    #allocation3 [shape = 'u8[311296]{0}', space=vmem, size = 0x4c000, scoped, tag = 'input window, operand 10, single buffered']
    #allocation4 [shape = 's32[2]{0}', space=sflag, size = 0x8, scoped, tag = 'scoped memory for heatmap_model_forward.1']
    #allocation5 [shape = 'u8[786432]{0}', space=vmem, size = 0xc0000, scoped, tag = 'input window, operand 14, single buffered']
    #allocation6 [shape = 's32[1]{0}', space=sflag, size = 0x4, scoped, tag = 'scoped memory for heatmap_model_forward.1']
    %22 = vsyncpa [#allocation4], 0
    %23 = vsyncpa [#allocation6], 0
    loop: start=0, step=1, limit=4
    $region2: #{heatmap_model_forward.1} parent=1 // loop_pre_header
      _
    $region3: #{heatmap_model_forward.1} parent=1 // loop_header
      %s25 = sphi 0, %s29
      %p26 = scmp.ge.s32.totalorder %s25, 4
      %s35 = sphi 0, %s37
      %s38 = sphi 0, %s35
      %s39 = sphi 0, %s38
      %s55 = sphi 0, %s39
      %s59 = sphi 0, %s59
      %s61 = sphi 0, %s59
      %s62 = sphi 0, %s61
      %s76 = sphi 0, %s62
      %s80 = sphi 0, %s80
      %s82 = sphi 0, %s80
      %s83 = sphi 0, %s82
      %s97 = sphi 0, %s83
      %s101 = sphi 0, %s101
      %s103 = sphi 0, %s101
      %s104 = sphi 0, %s103
      %s118 = sphi 0, %s104
      %s122 = sphi 0, %s122
      %s124 = sphi 0, %s122
      %s125 = sphi 0, %s124
      %s139 = sphi 0, %s125
      %s143 = sphi 0, %s143
      %s145 = sphi 0, %s143
      %s146 = sphi 0, %s145
      %s160 = sphi 0, %s146
      %s164 = sphi 0, %s164
      %s166 = sphi 0, %s164
      %s167 = sphi 0, %s166
      %s181 = sphi 0, %s167
      %s185 = sphi 0, %s185
      %s187 = sphi 0, %s185
      %s188 = sphi 0, %s187
      %s202 = sphi 0, %s188
      %s206 = sphi 0, %s206
      %s208 = sphi 0, %s206
      %s209 = sphi 0, %s208
      %s223 = sphi 0, %s209
      %s227 = sphi 0, %s227
      %s229 = sphi 0, %s227
      %s230 = sphi 0, %s229
      %s244 = sphi 0, %s230
      %s248 = sphi 0, %s248
      %s250 = sphi 0, %s248
      %s251 = sphi 0, %s250
      %s265 = sphi 0, %s251
      %s269 = sphi 0, %s269
      %s271 = sphi 0, %s269
      %s272 = sphi 0, %s271
      %s286 = sphi 0, %s272
      %s290 = sphi 0, %s290
      %s292 = sphi 0, %s290
      %s293 = sphi 0, %s292
      %s307 = sphi 0, %s293
      %s311 = sphi 0, %s311
      %s313 = sphi 0, %s311
      %s314 = sphi 0, %s313
      %s328 = sphi 0, %s314
      %s332 = sphi 0, %s332
      %s334 = sphi 0, %s332
      %s335 = sphi 0, %s334
      %s349 = sphi 0, %s335
      %s355 = sphi 0, %s357
      %s358 = sphi 0, %s355
      %s359 = sphi 0, %s358
      %s375 = sphi 0, %s359
    $region4: #{heatmap_model_forward.1} parent=1 // loop_header_branch
      %28 = sbr.rel (%p26) target = $region8
    $region5: #{heatmap_model_forward.1} parent=1 // loop_body
      %s30 = ssub.s32 %s25, 1
      %s31 = ssub.s32 %s25, 2
      %s32 = sadd.s32 %s25, 1
      %s33 = ssub.s32 %s25, %s32
      %p34 = scmp.eq.s32.totalorder %s33, 0
      %s36 = sadd.s32 %s35, 1
      %s37 = scalar_select %p34, %s35, %s36
      %p40 = pneg %p34
      %p41 = scmp.eq.s32.totalorder %s25, 1
      %p42 = por %p40, %p41
      %p43 = scmp.ne.s32.totalorder %s35, %s38
      %p44 = scmp.eq.s32.totalorder %s25, 0
      %p45 = por %p43, %p44
      %p46 = scmp.ne.s32.totalorder %s35, %s38
      %p47 = scmp.eq.s32.totalorder %s30, 1
      %p48 = por %p46, %p47
      %p49 = scmp.ne.s32.totalorder %s38, %s39
      %p50 = scmp.eq.s32.totalorder %s30, 0
      %p51 = por %p49, %p50
      %p52 = scmp.ne.s32.totalorder %s38, %s39
      %p53 = scmp.eq.s32.totalorder %s31, 1
      %p54 = por %p52, %p53
      %p56 = scmp.ne.s32.totalorder %s39, %s55
      %p57 = scmp.eq.s32.totalorder %s31, 0
      %p58 = por %p56, %p57
      %s60 = sadd.s32 %s59, 1
      %p63 = scmp.eq.s32.totalorder %s25, 1
      %p64 = scmp.ne.s32.totalorder %s59, %s61
      %p65 = scmp.eq.s32.totalorder %s25, 0
      %p66 = por %p64, %p65
      %p67 = scmp.ne.s32.totalorder %s59, %s61
      %p68 = scmp.eq.s32.totalorder %s30, 1
      %p69 = por %p67, %p68
      %p70 = scmp.ne.s32.totalorder %s61, %s62
      %p71 = scmp.eq.s32.totalorder %s30, 0
      %p72 = por %p70, %p71
      %p73 = scmp.ne.s32.totalorder %s61, %s62
      %p74 = scmp.eq.s32.totalorder %s31, 1
      %p75 = por %p73, %p74
      %p77 = scmp.ne.s32.totalorder %s62, %s76
      %p78 = scmp.eq.s32.totalorder %s31, 0
      %p79 = por %p77, %p78
      %s81 = sadd.s32 %s80, 1
      %p84 = scmp.eq.s32.totalorder %s25, 1
      %p85 = scmp.ne.s32.totalorder %s80, %s82
      %p86 = scmp.eq.s32.totalorder %s25, 0
      %p87 = por %p85, %p86
      %p88 = scmp.ne.s32.totalorder %s80, %s82
      %p89 = scmp.eq.s32.totalorder %s30, 1
      %p90 = por %p88, %p89
      %p91 = scmp.ne.s32.totalorder %s82, %s83
      %p92 = scmp.eq.s32.totalorder %s30, 0
      %p93 = por %p91, %p92
      %p94 = scmp.ne.s32.totalorder %s82, %s83
      %p95 = scmp.eq.s32.totalorder %s31, 1
      %p96 = por %p94, %p95
      %p98 = scmp.ne.s32.totalorder %s83, %s97
      %p99 = scmp.eq.s32.totalorder %s31, 0
      %p100 = por %p98, %p99
      %s102 = sadd.s32 %s101, 1
      %p105 = scmp.eq.s32.totalorder %s25, 1
      %p106 = scmp.ne.s32.totalorder %s101, %s103
      %p107 = scmp.eq.s32.totalorder %s25, 0
      %p108 = por %p106, %p107
      %p109 = scmp.ne.s32.totalorder %s101, %s103
      %p110 = scmp.eq.s32.totalorder %s30, 1
      %p111 = por %p109, %p110
      %p112 = scmp.ne.s32.totalorder %s103, %s104
      %p113 = scmp.eq.s32.totalorder %s30, 0
      %p114 = por %p112, %p113
      %p115 = scmp.ne.s32.totalorder %s103, %s104
      %p116 = scmp.eq.s32.totalorder %s31, 1
      %p117 = por %p115, %p116
      %p119 = scmp.ne.s32.totalorder %s104, %s118
      %p120 = scmp.eq.s32.totalorder %s31, 0
      %p121 = por %p119, %p120
      %s123 = sadd.s32 %s122, 1
      %p126 = scmp.eq.s32.totalorder %s25, 1
      %p127 = scmp.ne.s32.totalorder %s122, %s124
      %p128 = scmp.eq.s32.totalorder %s25, 0
      %p129 = por %p127, %p128
      %p130 = scmp.ne.s32.totalorder %s122, %s124
      %p131 = scmp.eq.s32.totalorder %s30, 1
      %p132 = por %p130, %p131
      %p133 = scmp.ne.s32.totalorder %s124, %s125
      %p134 = scmp.eq.s32.totalorder %s30, 0
      %p135 = por %p133, %p134
      %p136 = scmp.ne.s32.totalorder %s124, %s125
      %p137 = scmp.eq.s32.totalorder %s31, 1
      %p138 = por %p136, %p137
      %p140 = scmp.ne.s32.totalorder %s125, %s139
      %p141 = scmp.eq.s32.totalorder %s31, 0
      %p142 = por %p140, %p141
      %s144 = sadd.s32 %s143, 1
      %p147 = scmp.eq.s32.totalorder %s25, 1
      %p148 = scmp.ne.s32.totalorder %s143, %s145
      %p149 = scmp.eq.s32.totalorder %s25, 0
      %p150 = por %p148, %p149
      %p151 = scmp.ne.s32.totalorder %s143, %s145
      %p152 = scmp.eq.s32.totalorder %s30, 1
      %p153 = por %p151, %p152
      %p154 = scmp.ne.s32.totalorder %s145, %s146
      %p155 = scmp.eq.s32.totalorder %s30, 0
      %p156 = por %p154, %p155
      %p157 = scmp.ne.s32.totalorder %s145, %s146
      %p158 = scmp.eq.s32.totalorder %s31, 1
      %p159 = por %p157, %p158
      %p161 = scmp.ne.s32.totalorder %s146, %s160
      %p162 = scmp.eq.s32.totalorder %s31, 0
      %p163 = por %p161, %p162
      %s165 = sadd.s32 %s164, 1
      %p168 = scmp.eq.s32.totalorder %s25, 1
      %p169 = scmp.ne.s32.totalorder %s164, %s166
      %p170 = scmp.eq.s32.totalorder %s25, 0
      %p171 = por %p169, %p170
      %p172 = scmp.ne.s32.totalorder %s164, %s166
      %p173 = scmp.eq.s32.totalorder %s30, 1
      %p174 = por %p172, %p173
      %p175 = scmp.ne.s32.totalorder %s166, %s167
      %p176 = scmp.eq.s32.totalorder %s30, 0
      %p177 = por %p175, %p176
      %p178 = scmp.ne.s32.totalorder %s166, %s167
      %p179 = scmp.eq.s32.totalorder %s31, 1
      %p180 = por %p178, %p179
      %p182 = scmp.ne.s32.totalorder %s167, %s181
      %p183 = scmp.eq.s32.totalorder %s31, 0
      %p184 = por %p182, %p183
      %s186 = sadd.s32 %s185, 1
      %p189 = scmp.eq.s32.totalorder %s25, 1
      %p190 = scmp.ne.s32.totalorder %s185, %s187
      %p191 = scmp.eq.s32.totalorder %s25, 0
      %p192 = por %p190, %p191
      %p193 = scmp.ne.s32.totalorder %s185, %s187
      %p194 = scmp.eq.s32.totalorder %s30, 1
      %p195 = por %p193, %p194
      %p196 = scmp.ne.s32.totalorder %s187, %s188
      %p197 = scmp.eq.s32.totalorder %s30, 0
      %p198 = por %p196, %p197
      %p199 = scmp.ne.s32.totalorder %s187, %s188
      %p200 = scmp.eq.s32.totalorder %s31, 1
      %p201 = por %p199, %p200
      %p203 = scmp.ne.s32.totalorder %s188, %s202
      %p204 = scmp.eq.s32.totalorder %s31, 0
      %p205 = por %p203, %p204
      %s207 = sadd.s32 %s206, 1
      %p210 = scmp.eq.s32.totalorder %s25, 1
      %p211 = scmp.ne.s32.totalorder %s206, %s208
      %p212 = scmp.eq.s32.totalorder %s25, 0
      %p213 = por %p211, %p212
      %p214 = scmp.ne.s32.totalorder %s206, %s208
      %p215 = scmp.eq.s32.totalorder %s30, 1
      %p216 = por %p214, %p215
      %p217 = scmp.ne.s32.totalorder %s208, %s209
      %p218 = scmp.eq.s32.totalorder %s30, 0
      %p219 = por %p217, %p218
      %p220 = scmp.ne.s32.totalorder %s208, %s209
      %p221 = scmp.eq.s32.totalorder %s31, 1
      %p222 = por %p220, %p221
      %p224 = scmp.ne.s32.totalorder %s209, %s223
      %p225 = scmp.eq.s32.totalorder %s31, 0
      %p226 = por %p224, %p225
      %s228 = sadd.s32 %s227, 1
      %p231 = scmp.eq.s32.totalorder %s25, 1
      %p232 = scmp.ne.s32.totalorder %s227, %s229
      %p233 = scmp.eq.s32.totalorder %s25, 0
      %p234 = por %p232, %p233
      %p235 = scmp.ne.s32.totalorder %s227, %s229
      %p236 = scmp.eq.s32.totalorder %s30, 1
      %p237 = por %p235, %p236
      %p238 = scmp.ne.s32.totalorder %s229, %s230
      %p239 = scmp.eq.s32.totalorder %s30, 0
      %p240 = por %p238, %p239
      %p241 = scmp.ne.s32.totalorder %s229, %s230
      %p242 = scmp.eq.s32.totalorder %s31, 1
      %p243 = por %p241, %p242
      %p245 = scmp.ne.s32.totalorder %s230, %s244
      %p246 = scmp.eq.s32.totalorder %s31, 0
      %p247 = por %p245, %p246
      %s249 = sadd.s32 %s248, 1
      %p252 = scmp.eq.s32.totalorder %s25, 1
      %p253 = scmp.ne.s32.totalorder %s248, %s250
      %p254 = scmp.eq.s32.totalorder %s25, 0
      %p255 = por %p253, %p254
      %p256 = scmp.ne.s32.totalorder %s248, %s250
      %p257 = scmp.eq.s32.totalorder %s30, 1
      %p258 = por %p256, %p257
      %p259 = scmp.ne.s32.totalorder %s250, %s251
      %p260 = scmp.eq.s32.totalorder %s30, 0
      %p261 = por %p259, %p260
      %p262 = scmp.ne.s32.totalorder %s250, %s251
      %p263 = scmp.eq.s32.totalorder %s31, 1
      %p264 = por %p262, %p263
      %p266 = scmp.ne.s32.totalorder %s251, %s265
      %p267 = scmp.eq.s32.totalorder %s31, 0
      %p268 = por %p266, %p267
      %s270 = sadd.s32 %s269, 1
      %p273 = scmp.eq.s32.totalorder %s25, 1
      %p274 = scmp.ne.s32.totalorder %s269, %s271
      %p275 = scmp.eq.s32.totalorder %s25, 0
      %p276 = por %p274, %p275
      %p277 = scmp.ne.s32.totalorder %s269, %s271
      %p278 = scmp.eq.s32.totalorder %s30, 1
      %p279 = por %p277, %p278
      %p280 = scmp.ne.s32.totalorder %s271, %s272
      %p281 = scmp.eq.s32.totalorder %s30, 0
      %p282 = por %p280, %p281
      %p283 = scmp.ne.s32.totalorder %s271, %s272
      %p284 = scmp.eq.s32.totalorder %s31, 1
      %p285 = por %p283, %p284
      %p287 = scmp.ne.s32.totalorder %s272, %s286
      %p288 = scmp.eq.s32.totalorder %s31, 0
      %p289 = por %p287, %p288
      %s291 = sadd.s32 %s290, 1
      %p294 = scmp.eq.s32.totalorder %s25, 1
      %p295 = scmp.ne.s32.totalorder %s290, %s292
      %p296 = scmp.eq.s32.totalorder %s25, 0
      %p297 = por %p295, %p296
      %p298 = scmp.ne.s32.totalorder %s290, %s292
      %p299 = scmp.eq.s32.totalorder %s30, 1
      %p300 = por %p298, %p299
      %p301 = scmp.ne.s32.totalorder %s292, %s293
      %p302 = scmp.eq.s32.totalorder %s30, 0
      %p303 = por %p301, %p302
      %p304 = scmp.ne.s32.totalorder %s292, %s293
      %p305 = scmp.eq.s32.totalorder %s31, 1
      %p306 = por %p304, %p305
      %p308 = scmp.ne.s32.totalorder %s293, %s307
      %p309 = scmp.eq.s32.totalorder %s31, 0
      %p310 = por %p308, %p309
      %s312 = sadd.s32 %s311, 1
      %p315 = scmp.eq.s32.totalorder %s25, 1
      %p316 = scmp.ne.s32.totalorder %s311, %s313
      %p317 = scmp.eq.s32.totalorder %s25, 0
      %p318 = por %p316, %p317
      %p319 = scmp.ne.s32.totalorder %s311, %s313
      %p320 = scmp.eq.s32.totalorder %s30, 1
      %p321 = por %p319, %p320
      %p322 = scmp.ne.s32.totalorder %s313, %s314
      %p323 = scmp.eq.s32.totalorder %s30, 0
      %p324 = por %p322, %p323
      %p325 = scmp.ne.s32.totalorder %s313, %s314
      %p326 = scmp.eq.s32.totalorder %s31, 1
      %p327 = por %p325, %p326
      %p329 = scmp.ne.s32.totalorder %s314, %s328
      %p330 = scmp.eq.s32.totalorder %s31, 0
      %p331 = por %p329, %p330
      %s333 = sadd.s32 %s332, 1
      %p336 = scmp.eq.s32.totalorder %s25, 1
      %p337 = scmp.ne.s32.totalorder %s332, %s334
      %p338 = scmp.eq.s32.totalorder %s25, 0
      %p339 = por %p337, %p338
      %p340 = scmp.ne.s32.totalorder %s332, %s334
      %p341 = scmp.eq.s32.totalorder %s30, 1
      %p342 = por %p340, %p341
      %p343 = scmp.ne.s32.totalorder %s334, %s335
      %p344 = scmp.eq.s32.totalorder %s30, 0
      %p345 = por %p343, %p344
      %p346 = scmp.ne.s32.totalorder %s334, %s335
      %p347 = scmp.eq.s32.totalorder %s31, 1
      %p348 = por %p346, %p347
      %p350 = scmp.ne.s32.totalorder %s335, %s349
      %p351 = scmp.eq.s32.totalorder %s31, 0
      %p352 = por %p350, %p351
      %s353 = ssub.s32 %s25, %s32
      %p354 = scmp.eq.s32.totalorder %s353, 0
      %s356 = sadd.s32 %s355, 1
      %s357 = scalar_select %p354, %s355, %s356
      %p360 = pneg %p354
      %p361 = scmp.eq.s32.totalorder %s25, 1
      %p362 = por %p360, %p361
      %p363 = scmp.ne.s32.totalorder %s355, %s358
      %p364 = scmp.eq.s32.totalorder %s25, 0
      %p365 = por %p363, %p364
      %p366 = scmp.ne.s32.totalorder %s355, %s358
      %p367 = scmp.eq.s32.totalorder %s30, 1
      %p368 = por %p366, %p367
      %p369 = scmp.ne.s32.totalorder %s358, %s359
      %p370 = scmp.eq.s32.totalorder %s30, 0
      %p371 = por %p369, %p370
      %p372 = scmp.ne.s32.totalorder %s358, %s359
      %p373 = scmp.eq.s32.totalorder %s31, 1
      %p374 = por %p372, %p373
      %p376 = scmp.ne.s32.totalorder %s359, %s375
      %p377 = scmp.eq.s32.totalorder %s31, 0
      %p378 = por %p376, %p377
      %p379 = scmp.le.s32.totalorder 1, %s25
      %p380 = scmp.lt.s32.totalorder %s25, 3
      %p381 = pnand %p379, %p380
      %p382 = pneg %p381
      // Predicated region
      $region9: #{heatmap_model_forward.1} parent=5 // pred_check
        _
      $region10: #{heatmap_model_forward.1} parent=5 // pred_check_branch
        %384 = sbr.rel (%p381) target = $region12
      $region11: #{heatmap_model_forward.1} parent=5 // pred_region
        %s385 = ssub.s32 %s25, 1
        // Predicated region
        $region13: #{heatmap_model_forward.1} parent=11 // pred_check
          %p386 = pneg %p72
        $region14: #{heatmap_model_forward.1} parent=11 // pred_check_branch
          %388 = sbr.rel (%p386) target = $region16
        $region15: #{heatmap_model_forward.1} parent=11 // pred_region
          _
        $region16: #{heatmap_model_forward.1} parent=11 // pred_fallthru
          _
        // Predicated region
        $region17: #{heatmap_model_forward.1} parent=11 // pred_check
          %p389 = pneg %p93
        $region18: #{heatmap_model_forward.1} parent=11 // pred_check_branch
          %391 = sbr.rel (%p389) target = $region20
        $region19: #{heatmap_model_forward.1} parent=11 // pred_region
          _
        $region20: #{heatmap_model_forward.1} parent=11 // pred_fallthru
          _
        // Predicated region
        $region21: #{heatmap_model_forward.1} parent=11 // pred_check
          %p392 = pneg %p114
        $region22: #{heatmap_model_forward.1} parent=11 // pred_check_branch
          %394 = sbr.rel (%p392) target = $region24
        $region23: #{heatmap_model_forward.1} parent=11 // pred_region
          _
        $region24: #{heatmap_model_forward.1} parent=11 // pred_fallthru
          _
        // Predicated region
        $region25: #{heatmap_model_forward.1} parent=11 // pred_check
          %p395 = pneg %p135
        $region26: #{heatmap_model_forward.1} parent=11 // pred_check_branch
          %397 = sbr.rel (%p395) target = $region28
        $region27: #{heatmap_model_forward.1} parent=11 // pred_region
          _
        $region28: #{heatmap_model_forward.1} parent=11 // pred_fallthru
          _
        // Predicated region
        $region29: #{heatmap_model_forward.1} parent=11 // pred_check
          %p398 = pneg %p156
        $region30: #{heatmap_model_forward.1} parent=11 // pred_check_branch
          %400 = sbr.rel (%p398) target = $region32
        $region31: #{heatmap_model_forward.1} parent=11 // pred_region
          _
        $region32: #{heatmap_model_forward.1} parent=11 // pred_fallthru
          _
        // Predicated region
        $region33: #{heatmap_model_forward.1} parent=11 // pred_check
          %p401 = pneg %p177
        $region34: #{heatmap_model_forward.1} parent=11 // pred_check_branch
          %403 = sbr.rel (%p401) target = $region36
        $region35: #{heatmap_model_forward.1} parent=11 // pred_region
          _
        $region36: #{heatmap_model_forward.1} parent=11 // pred_fallthru
          _
        // Predicated region
        $region37: #{heatmap_model_forward.1} parent=11 // pred_check
          %p404 = pneg %p198
        $region38: #{heatmap_model_forward.1} parent=11 // pred_check_branch
          %406 = sbr.rel (%p404) target = $region40
        $region39: #{heatmap_model_forward.1} parent=11 // pred_region
          _
        $region40: #{heatmap_model_forward.1} parent=11 // pred_fallthru
          _
        // Predicated region
        $region41: #{heatmap_model_forward.1} parent=11 // pred_check
          %p407 = pneg %p219
        $region42: #{heatmap_model_forward.1} parent=11 // pred_check_branch
          %409 = sbr.rel (%p407) target = $region44
        $region43: #{heatmap_model_forward.1} parent=11 // pred_region
          _
        $region44: #{heatmap_model_forward.1} parent=11 // pred_fallthru
          _
        // Predicated region
        $region45: #{heatmap_model_forward.1} parent=11 // pred_check
          %p410 = pneg %p240
        $region46: #{heatmap_model_forward.1} parent=11 // pred_check_branch
          %412 = sbr.rel (%p410) target = $region48
        $region47: #{heatmap_model_forward.1} parent=11 // pred_region
          _
        $region48: #{heatmap_model_forward.1} parent=11 // pred_fallthru
          _
        // Predicated region
        $region49: #{heatmap_model_forward.1} parent=11 // pred_check
          %p413 = pneg %p261
        $region50: #{heatmap_model_forward.1} parent=11 // pred_check_branch
          %415 = sbr.rel (%p413) target = $region52
        $region51: #{heatmap_model_forward.1} parent=11 // pred_region
          %s417 = ssub.s32 9728, 9728
          %418 = vsyncadd [#allocation4], %s417
          %s419 = sshll.u32 [#allocation3], 4
          %s420 = int_to_ptr.vmem [resolvable:$true] %s419
          %425 = dma.hbm_to_vmem [thread:$0]  %s10, 9728, %s420, [#allocation4], 256, 256, 16
        $region52: #{heatmap_model_forward.1} parent=11 // pred_fallthru
          _
        // Predicated region
        $region53: #{heatmap_model_forward.1} parent=11 // pred_check
          %p426 = pneg %p282
        $region54: #{heatmap_model_forward.1} parent=11 // pred_check_branch
          %428 = sbr.rel (%p426) target = $region56
        $region55: #{heatmap_model_forward.1} parent=11 // pred_region
          _
        $region56: #{heatmap_model_forward.1} parent=11 // pred_fallthru
          _
        // Predicated region
        $region57: #{heatmap_model_forward.1} parent=11 // pred_check
          %p429 = pneg %p303
        $region58: #{heatmap_model_forward.1} parent=11 // pred_check_branch
          %431 = sbr.rel (%p429) target = $region60
        $region59: #{heatmap_model_forward.1} parent=11 // pred_region
          _
        $region60: #{heatmap_model_forward.1} parent=11 // pred_fallthru
          _
        // Predicated region
        $region61: #{heatmap_model_forward.1} parent=11 // pred_check
          %p432 = pneg %p324
        $region62: #{heatmap_model_forward.1} parent=11 // pred_check_branch
          %434 = sbr.rel (%p432) target = $region64
        $region63: #{heatmap_model_forward.1} parent=11 // pred_region
          _
        $region64: #{heatmap_model_forward.1} parent=11 // pred_fallthru
          _
        // Predicated region
        $region65: #{heatmap_model_forward.1} parent=11 // pred_check
          %p435 = pneg %p345
        $region66: #{heatmap_model_forward.1} parent=11 // pred_check_branch
          %437 = sbr.rel (%p435) target = $region68
        $region67: #{heatmap_model_forward.1} parent=11 // pred_region
          %s439 = ssub.s32 24576, 24576
          %440 = vsyncadd [#allocation6], %s439
          %s441 = sshll.u32 [#allocation5], 4
          %s442 = int_to_ptr.vmem [resolvable:$true] %s441
          %447 = dma.hbm_to_vmem [thread:$0]  %s14, 24576, %s442, [#allocation6], 768, 768, 48
        $region68: #{heatmap_model_forward.1} parent=11 // pred_fallthru
          _
      $region12: #{heatmap_model_forward.1} parent=5 // pred_fallthru
        _
      %p448 = scmp.lt.s32.totalorder %s25, 2
      // Predicated region
      $region69: #{heatmap_model_forward.1} parent=5 // pred_check
        %p449 = pneg %p448
      $region70: #{heatmap_model_forward.1} parent=5 // pred_check_branch
        %451 = sbr.rel (%p449) target = $region72
      $region71: #{heatmap_model_forward.1} parent=5 // pred_region
        // Predicated region
        $region73: #{heatmap_model_forward.1} parent=71 // pred_check
          %p452 = pneg %p45
        $region74: #{heatmap_model_forward.1} parent=71 // pred_check_branch
          %454 = sbr.rel (%p452) target = $region76
        $region75: #{heatmap_model_forward.1} parent=71 // pred_region
          %p455 = scmp.lt.s32.totalorder %s25, 1
          %s456 = scalar_select %p455, %s25, 1
          %s457 = smul.addr %s456, 2
          %s458 = smul.addr %s457, 8
          %s459 = scalar_lea.vmem %s0, %s458
        $region76: #{heatmap_model_forward.1} parent=71 // pred_fallthru
          _
      $region72: #{heatmap_model_forward.1} parent=5 // pred_fallthru
        _
      %p460 = scmp.le.s32.totalorder 1, %s25
      %p461 = scmp.lt.s32.totalorder %s25, 3
      %p462 = pnand %p460, %p461
      %p463 = pneg %p462
      // Predicated region
      $region77: #{heatmap_model_forward.1} parent=5 // pred_check
        _
      $region78: #{heatmap_model_forward.1} parent=5 // pred_check_branch
        %465 = sbr.rel (%p462) target = $region80
      $region79: #{heatmap_model_forward.1} parent=5 // pred_region
        %s466 = ssub.s32 %s25, 1
        // Predicated region
        $region81: #{heatmap_model_forward.1} parent=79 // pred_check
          %p467 = pneg %p261
        $region82: #{heatmap_model_forward.1} parent=79 // pred_check_branch
          %469 = sbr.rel (%p467) target = $region84
        $region83: #{heatmap_model_forward.1} parent=79 // pred_region
          %470 = dma.done [#allocation4], 9728
        $region84: #{heatmap_model_forward.1} parent=79 // pred_fallthru
          _
        // Predicated region
        $region85: #{heatmap_model_forward.1} parent=79 // pred_check
          %p471 = pneg %p345
        $region86: #{heatmap_model_forward.1} parent=79 // pred_check_branch
          %473 = sbr.rel (%p471) target = $region88
        $region87: #{heatmap_model_forward.1} parent=79 // pred_region
          %474 = dma.done [#allocation6], 24576
        $region88: #{heatmap_model_forward.1} parent=79 // pred_fallthru
          _
        %p475 = scmp.lt.s32.totalorder %s30, 1
        %s476 = scalar_select %p475, %s30, 1
        %s477 = smul.addr %s476, 2
        %s478 = smul.addr %s477, 8
        %s479 = scalar_lea.vmem %s0, %s478
        %p480 = pneg %p51
        %p481 = pneg %p48
        %p482 = pneg %p72
        %p483 = pneg %p69
        %p484 = pneg %p93
        %p485 = pneg %p90
        %p486 = pneg %p114
        %p487 = pneg %p111
        %p488 = pneg %p135
        %p489 = pneg %p132
        %p490 = pneg %p156
        %p491 = pneg %p153
        %p492 = pneg %p177
        %p493 = pneg %p174
        %p494 = pneg %p198
        %p495 = pneg %p195
        %p496 = pneg %p219
        %p497 = pneg %p216
        %p498 = pneg %p240
        %p499 = pneg %p237
        %p500 = pneg %p261
        %p501 = pneg %p258
        %p502 = pneg %p282
        %p503 = pneg %p279
        %p504 = pneg %p303
        %p505 = pneg %p300
        %p506 = pneg %p324
        %p507 = pneg %p321
        %p508 = pneg %p345
        %p509 = pneg %p342
        %p510 = pneg %p371
        %p511 = pneg %p368
        %p512 = scmp.lt.s32.totalorder %s30, 1
        %s513 = scalar_select %p512, %s30, 1
        %s514 = smul.addr %s513, 6
        %s515 = scalar_lea.vmem %s15, %s514
        %p516 = scmp.lt.s32.totalorder %s30, 1
        %s517 = scalar_select %p516, %s30, 1
        %s518 = smul.addr %s517, 2
        %s519 = smul.addr %s518, 8
        %s520 = scalar_lea.vmem %s0, %s519
        %p521 = scmp.lt.s32.totalorder %s30, 1
        %s522 = scalar_select %p521, %s30, 1
        %s523 = smul.addr %s522, 6
        %s524 = scalar_lea.vmem %s15, %s523
        %v525 = vld [vmem:[%s1] sm:$0xff]
        %v526 = vld [vmem:[%s1 + $0x8] sm:$0xff]
        %v527 = vld [vmem:[%s1 + $0x10] sm:$0x1]
        %v528 = vld [vmem:[%s1 + $0x18] sm:$0x1]
        %v529 = vld [vmem:[%s520] sm:$0xff]
        %v530 = vld [vmem:[%s520 + $0x8] sm:$0xff]
        %v531 = vld [vmem:[%s2] sm:$0xff]
        %v532 = vld [vmem:[%s2 + $0x8] sm:$0xff]
        %v533 = vld [vmem:[%s3] sm:$0xff]
        %v534 = vld [vmem:[%s3 + $0x8] sm:$0xff]
        %536 = vrot.lane.b32.xlu0 %v530, 17
        %v537 = vpop.permute.xlu0 %536
        %540 = vrot.lane.b32.xlu0 %v529, 17
        %v541 = vpop.permute.xlu0 %540
        %vm542 = vcmask 138240
        %v543 = vsel %vm542, %v541, %v537
        %v546 = vsel %vm542, %v537, %v541
        %v547 = vlaneseq
        %v548 = vshrl.u32 %v547, 7
        %v549 = vsub.s32 0, %v548
        %v550 = vrot.slane %v525, %v549
        %v551 = vlaneseq
        %v552 = vshrl.u32 %v551, 7
        %v553 = vsub.s32 0, %v552
        %v554 = vrot.slane %v526, %v553
        %v555 = vmul.f32 %v546, %v550
        %v556 = vmul.f32 %v543, %v554
        %557 = vrot.lane.b32.xlu0 %v530, 16
        %v558 = vpop.permute.xlu0 %557
        %560 = vrot.lane.b32.xlu0 %v529, 16
        %v561 = vpop.permute.xlu0 %560
        %vm562 = vcmask 130048
        %v563 = vsel %vm562, %v561, %v558
        %v566 = vsel %vm562, %v558, %v561
        %v567 = vlaneseq
        %v568 = vshrl.u32 %v567, 7
        %v569 = vsub.s32 1, %v568
        %v570 = vrot.slane %v525, %v569
        %v571 = vlaneseq
        %v572 = vshrl.u32 %v571, 7
        %v573 = vsub.s32 1, %v572
        %v574 = vrot.slane %v526, %v573
        %v575 = vmul.f32 %v566, %v570
        %v576 = vmul.f32 %v563, %v574
        %577 = vrot.lane.b32.xlu0 %v530, 15
        %v578 = vpop.permute.xlu0 %577
        %580 = vrot.lane.b32.xlu0 %v529, 15
        %v581 = vpop.permute.xlu0 %580
        %vm582 = vcmask 121856
        %v583 = vsel %vm582, %v581, %v578
        %v586 = vsel %vm582, %v578, %v581
        %v587 = vlaneseq
        %v588 = vshrl.u32 %v587, 7
        %v589 = vsub.s32 2, %v588
        %v590 = vrot.slane %v525, %v589
        %v591 = vlaneseq
        %v592 = vshrl.u32 %v591, 7
        %v593 = vsub.s32 2, %v592
        %v594 = vrot.slane %v526, %v593
        %v595 = vmul.f32 %v586, %v590
        %v596 = vmul.f32 %v583, %v594
        %597 = vrot.lane.b32.xlu0 %v530, 1
        %v598 = vpop.permute.xlu0 %597
        %600 = vrot.lane.b32.xlu0 %v529, 1
        %v601 = vpop.permute.xlu0 %600
        %vm602 = vcmask 7168
        %v603 = vsel %vm602, %v601, %v598
        %v606 = vsel %vm602, %v598, %v601
        %v607 = vlaneseq
        %v608 = vshrl.u32 %v607, 7
        %v609 = vsub.s32 3, %v608
        %v610 = vrot.slane %v525, %v609
        %v611 = vlaneseq
        %v612 = vshrl.u32 %v611, 7
        %v613 = vsub.s32 3, %v612
        %v614 = vrot.slane %v526, %v613
        %v615 = vmul.f32 %v606, %v610
        %v616 = vmul.f32 %v603, %v614
        %617 = vrot.lane.b32.xlu0 %v529, 127
        %v618 = vpop.permute.xlu0 %617
        %619 = vrot.lane.b32.xlu0 %v530, 127
        %v620 = vpop.permute.xlu0 %619
        %vm621 = vcmask 1039360
        %v622 = vsel %vm621, %v618, %v620
        %v626 = vsel %vm621, %v620, %v618
        %v627 = vlaneseq
        %v628 = vshrl.u32 %v627, 7
        %v629 = vsub.s32 5, %v628
        %v630 = vrot.slane %v525, %v629
        %v631 = vlaneseq
        %v632 = vshrl.u32 %v631, 7
        %v633 = vsub.s32 5, %v632
        %v634 = vrot.slane %v526, %v633
        %v635 = vmul.f32 %v622, %v630
        %v636 = vmul.f32 %v626, %v634
        %637 = vrot.lane.b32.xlu0 %v529, 113
        %v638 = vpop.permute.xlu0 %637
        %639 = vrot.lane.b32.xlu0 %v530, 113
        %v640 = vpop.permute.xlu0 %639
        %vm641 = vcmask 924672
        %v642 = vsel %vm641, %v638, %v640
        %v646 = vsel %vm641, %v640, %v638
        %v647 = vlaneseq
        %v648 = vshrl.u32 %v647, 7
        %v649 = vsub.s32 6, %v648
        %v650 = vrot.slane %v525, %v649
        %v651 = vlaneseq
        %v652 = vshrl.u32 %v651, 7
        %v653 = vsub.s32 6, %v652
        %v654 = vrot.slane %v526, %v653
        %v655 = vmul.f32 %v642, %v650
        %v656 = vmul.f32 %v646, %v654
        %657 = vrot.lane.b32.xlu0 %v529, 112
        %v658 = vpop.permute.xlu0 %657
        %659 = vrot.lane.b32.xlu0 %v530, 112
        %v660 = vpop.permute.xlu0 %659
        %vm661 = vcmask 916480
        %v662 = vsel %vm661, %v658, %v660
        %v666 = vsel %vm661, %v660, %v658
        %v667 = vlaneseq
        %v668 = vshrl.u32 %v667, 7
        %v669 = vsub.s32 7, %v668
        %v670 = vrot.slane %v525, %v669
        %v671 = vlaneseq
        %v672 = vshrl.u32 %v671, 7
        %v673 = vsub.s32 7, %v672
        %v674 = vrot.slane %v526, %v673
        %v675 = vmul.f32 %v662, %v670
        %v676 = vmul.f32 %v666, %v674
        %677 = vrot.lane.b32.xlu0 %v529, 111
        %v678 = vpop.permute.xlu0 %677
        %679 = vrot.lane.b32.xlu0 %v530, 111
        %v680 = vpop.permute.xlu0 %679
        %vm681 = vcmask 908288
        %v682 = vsel %vm681, %v678, %v680
        %v686 = vsel %vm681, %v680, %v678
        %v687 = vlaneseq
        %v688 = vshrl.u32 %v687, 7
        %v689 = vsub.s32 0, %v688
        %v690 = vrot.slane %v527, %v689
        %v691 = vlaneseq
        %v692 = vshrl.u32 %v691, 7
        %v693 = vsub.s32 0, %v692
        %v694 = vrot.slane %v528, %v693
        %v695 = vmul.f32 %v682, %v690
        %v696 = vmul.f32 %v686, %v694
        %698 = vset.pattern.permute.xlu0 0
        %699 = vperm.xlu0 %698, %v533
        %v700 = vpop.permute.xlu0 %699
        %703 = vset.pattern.permute.xlu0 0
        %704 = vperm.xlu0 %703, %v534
        %v705 = vpop.permute.xlu0 %704
        %vm707 = vcmask 588800
        %v709 = vsel %vm707, %v531, 0
        %v712 = vsel %vm707, %v532, 0
        %714 = vmatprep.subr.mxu0 %v556
        %715 = vmatpush1.msra.mxu0 %v555
        %716 = vmatprep.subr.mxu0 %v576
        %717 = vmatpush1.msra.mxu0 %v575
        %718 = vmatprep.subr.mxu0 %v596
        %719 = vmatpush1.msra.mxu0 %v595
        %720 = vmatprep.subr.mxu0 %v616
        %721 = vmatpush1.msra.mxu0 %v615
        %722 = vmatprep.subr.mxu0 %v530
        %723 = vmatpush1.msra.mxu0 %v529
        %724 = vmatprep.subr.mxu0 %v636
        %725 = vmatpush1.msra.mxu0 %v635
        %726 = vmatprep.subr.mxu0 %v656
        %727 = vmatpush1.msra.mxu0 %v655
        %728 = vmatprep.subr.mxu0 %v676
        %729 = vmatpush1.msra.mxu0 %v675
        %730 = vmatprep.subr.mxu0 %v696
        %731 = vmatpush1.msra.mxu0 %v695
        %732 = vmatprep.subr.mxu0 0.0
        %733 = vmatpush1.msra.mxu0 0.0
        %734 = vmatprep.subr.mxu0 0.0
        %735 = vmatpush1.msra.mxu0 0.0
        %736 = vmatprep.subr.mxu0 0.0
        %737 = vmatpush1.msra.mxu0 0.0
        %738 = vmatprep.subr.mxu0 0.0
        %739 = vmatpush1.msra.mxu0 0.0
        %740 = vmatprep.subr.mxu0 0.0
        %741 = vmatpush1.msra.mxu0 0.0
        %742 = vmatprep.subr.mxu0 0.0
        %743 = vmatpush1.msra.mxu0 0.0
        %744 = vmatprep.subr.mxu0 0.0
        %745 = vmatpush1.msra.mxu0 0.0
        %746 = vmatprep.subr.mxu0 0.0
        %747 = vmatpush1.msra.mxu0 0.0
        %748 = vmatprep.subr.mxu0 0.0
        %749 = vmatpush1.msra.mxu0 0.0
        %750 = vmatprep.subr.mxu0 0.0
        %751 = vmatpush1.msra.mxu0 0.0
        %752 = vmatprep.subr.mxu0 0.0
        %753 = vmatpush1.msra.mxu0 0.0
        %754 = vmatprep.subr.mxu0 0.0
        %755 = vmatpush1.msra.mxu0 0.0
        %756 = vmatprep.subr.mxu0 0.0
        %757 = vmatpush1.msra.mxu0 0.0
        %758 = vmatprep.subr.mxu0 0.0
        %759 = vmatpush1.msra.mxu0 0.0
        %760 = vmatprep.subr.mxu0 0.0
        %761 = vmatpush1.msra.mxu0 0.0
        %762 = vmatprep.subr.mxu0 0.0
        %763 = vmatpush1.msra.mxu0 0.0
        %764 = vmatprep.subr.mxu0 0.0
        %765 = vmatpush1.msra.mxu0 0.0
        %766 = vmatprep.subr.mxu0 0.0
        %767 = vmatpush1.msra.mxu0 0.0
        %768 = vmatprep.subr.mxu0 0.0
        %769 = vmatpush1.msra.mxu0 0.0
        %770 = vmatprep.subr.mxu0 0.0
        %771 = vmatpush1.msra.mxu0 0.0
        %772 = vmatprep.subr.mxu0 0.0
        %773 = vmatpush1.msra.mxu0 0.0
        %774 = vmatprep.subr.mxu0 0.0
        %775 = vmatpush1.msra.mxu0 0.0
        %776 = vmatprep.subr.mxu0 0.0
        %777 = vmatpush1.msra.mxu0 0.0
        %778 = vmatprep.mubr.f32.mxu0 0.0
        %779 = vmatmul.mubr.f32.gmra.mrb[0].mxu0 %v709
        %v780 = vpop.f32.mrb[0].mxu0
        %v781 = vadd.f32 %v700, %v780
        %v782 = vpop.f32.mrb[0].mxu0
        %v783 = vadd.f32 %v700, %v782
        %784 = vmatprep.mubr.f32.mxu0 0.0
        %785 = vmatmul.mubr.f32.gmra.mrb[0].mxu0 %v712
        %v786 = vpop.f32.mrb[0].mxu0
        %v787 = vadd.f32 %v705, %v786
        %v788 = vpop.f32.mrb[0].mxu0
        %v789 = vadd.f32 %v705, %v788
        %790 = vdwg.mxu0
        %vm791 = vcmp.ge.f32.partialorder %v781, 0.0
        %vm792 = vcmp.ge.f32.partialorder %v783, 0.0
        %vm793 = vcmp.ge.f32.partialorder %v787, 0.0
        %vm794 = vcmp.ge.f32.partialorder %v789, 0.0
        %v795 = vmul.f32 %v781, 0.1
        %v796 = vmul.f32 %v783, 0.1
        %v797 = vmul.f32 %v787, 0.1
        %v798 = vmul.f32 %v789, 0.1
        %v799 = vsel %vm791, %v781, %v795
        %v800 = vsel %vm792, %v783, %v796
        %v801 = vsel %vm793, %v787, %v797
        %v802 = vsel %vm794, %v789, %v798
        %v803 = vld [vmem:[%s4] sm:$0xff]
        %v804 = vld [vmem:[%s4 + $0x8] sm:$0xff]
        %v805 = vld [vmem:[%s5] sm:$0xff]
        %v806 = vld [vmem:[%s5 + $0x8] sm:$0xff]
        %808 = vset.pattern.permute.xlu0 0
        %809 = vperm.xlu0 %808, %v805
        %v810 = vpop.permute.xlu0 %809
        %813 = vset.pattern.permute.xlu0 0
        %814 = vperm.xlu0 %813, %v806
        %v815 = vpop.permute.xlu0 %814
        %vm817 = vcmask 64512
        %v819 = vsel %vm817, %v803, 0
        %v822 = vsel %vm817, %v804, 0
        %824 = vmatprep.subr.mxu0 %v530
        %825 = vmatpush1.msra.mxu0 %v529
        %826 = vmatprep.subr.mxu0 0.0
        %827 = vmatpush1.msra.mxu0 0.0
        %828 = vmatprep.subr.mxu0 0.0
        %829 = vmatpush1.msra.mxu0 0.0
        %830 = vmatprep.subr.mxu0 0.0
        %831 = vmatpush1.msra.mxu0 0.0
        %832 = vmatprep.subr.mxu0 0.0
        %833 = vmatpush1.msra.mxu0 0.0
        %834 = vmatprep.subr.mxu0 0.0
        %835 = vmatpush1.msra.mxu0 0.0
        %836 = vmatprep.subr.mxu0 0.0
        %837 = vmatpush1.msra.mxu0 0.0
        %838 = vmatprep.subr.mxu0 0.0
        %839 = vmatpush1.msra.mxu0 0.0
        %840 = vmatprep.subr.mxu0 0.0
        %841 = vmatpush1.msra.mxu0 0.0
        %842 = vmatprep.subr.mxu0 0.0
        %843 = vmatpush1.msra.mxu0 0.0
        %844 = vmatprep.subr.mxu0 0.0
        %845 = vmatpush1.msra.mxu0 0.0
        %846 = vmatprep.subr.mxu0 0.0
        %847 = vmatpush1.msra.mxu0 0.0
        %848 = vmatprep.subr.mxu0 0.0
        %849 = vmatpush1.msra.mxu0 0.0
        %850 = vmatprep.subr.mxu0 0.0
        %851 = vmatpush1.msra.mxu0 0.0
        %852 = vmatprep.subr.mxu0 0.0
        %853 = vmatpush1.msra.mxu0 0.0
        %854 = vmatprep.subr.mxu0 0.0
        %855 = vmatpush1.msra.mxu0 0.0
        %856 = vmatprep.subr.mxu0 0.0
        %857 = vmatpush1.msra.mxu0 0.0
        %858 = vmatprep.subr.mxu0 0.0
        %859 = vmatpush1.msra.mxu0 0.0
        %860 = vmatprep.subr.mxu0 0.0
        %861 = vmatpush1.msra.mxu0 0.0
        %862 = vmatprep.subr.mxu0 0.0
        %863 = vmatpush1.msra.mxu0 0.0
        %864 = vmatprep.subr.mxu0 0.0
        %865 = vmatpush1.msra.mxu0 0.0
        %866 = vmatprep.subr.mxu0 0.0
        %867 = vmatpush1.msra.mxu0 0.0
        %868 = vmatprep.subr.mxu0 0.0
        %869 = vmatpush1.msra.mxu0 0.0
        %870 = vmatprep.subr.mxu0 0.0
        %871 = vmatpush1.msra.mxu0 0.0
        %872 = vmatprep.subr.mxu0 0.0
        %873 = vmatpush1.msra.mxu0 0.0
        %874 = vmatprep.subr.mxu0 0.0
        %875 = vmatpush1.msra.mxu0 0.0
        %876 = vmatprep.subr.mxu0 0.0
        %877 = vmatpush1.msra.mxu0 0.0
        %878 = vmatprep.subr.mxu0 0.0
        %879 = vmatpush1.msra.mxu0 0.0
        %880 = vmatprep.subr.mxu0 0.0
        %881 = vmatpush1.msra.mxu0 0.0
        %882 = vmatprep.subr.mxu0 0.0
        %883 = vmatpush1.msra.mxu0 0.0
        %884 = vmatprep.subr.mxu0 0.0
        %885 = vmatpush1.msra.mxu0 0.0
        %886 = vmatprep.subr.mxu0 0.0
        %887 = vmatpush1.msra.mxu0 0.0
        %888 = vmatprep.mubr.f32.mxu0 0.0
        %889 = vmatmul.mubr.f32.gmra.mrb[0].mxu0 %v819
        %v890 = vpop.f32.mrb[0].mxu0
        %v891 = vadd.f32 %v810, %v890
        %v892 = vpop.f32.mrb[0].mxu0
        %v893 = vadd.f32 %v810, %v892
        %894 = vmatprep.mubr.f32.mxu0 0.0
        %895 = vmatmul.mubr.f32.gmra.mrb[0].mxu0 %v822
        %v896 = vpop.f32.mrb[0].mxu0
        %v897 = vadd.f32 %v815, %v896
        %v898 = vpop.f32.mrb[0].mxu0
        %v899 = vadd.f32 %v815, %v898
        %900 = vdwg.mxu0
        %v901 = vld [vmem:[%s6] sm:$0xff]
        %v902 = vld [vmem:[%s6 + $0x8] sm:$0xff]
        %v903 = vld [vmem:[%s6 + $0x10] sm:$0xff]
        %v904 = vld [vmem:[%s6 + $0x18] sm:$0xff]
        %v905 = vld [vmem:[%s7] sm:$0xff]
        %v906 = vld [vmem:[%s7 + $0x8] sm:$0xff]
        %909 = vrot.lane.b32.xlu0 %v800, 17
        %v910 = vpop.permute.xlu0 %909
        %911 = vrot.lane.b32.xlu0 %v802, 17
        %v912 = vpop.permute.xlu0 %911
        %917 = vrot.lane.b32.xlu0 %v799, 17
        %v918 = vpop.permute.xlu0 %917
        %919 = vrot.lane.b32.xlu0 %v801, 17
        %v920 = vpop.permute.xlu0 %919
        %v921 = vsel %vm542, %v918, %v910
        %v922 = vsel %vm542, %v920, %v912
        %v927 = vsel %vm542, %v910, %v918
        %v928 = vsel %vm542, %v912, %v920
        %v929 = vmul.f32 %v927, %v550
        %v930 = vmul.f32 %v921, %v554
        %v931 = vmul.f32 %v928, %v550
        %v932 = vmul.f32 %v922, %v554
        %933 = vrot.lane.b32.xlu0 %v800, 16
        %v934 = vpop.permute.xlu0 %933
        %935 = vrot.lane.b32.xlu0 %v802, 16
        %v936 = vpop.permute.xlu0 %935
        %939 = vrot.lane.b32.xlu0 %v799, 16
        %v940 = vpop.permute.xlu0 %939
        %941 = vrot.lane.b32.xlu0 %v801, 16
        %v942 = vpop.permute.xlu0 %941
        %v943 = vsel %vm562, %v940, %v934
        %v944 = vsel %vm562, %v942, %v936
        %v949 = vsel %vm562, %v934, %v940
        %v950 = vsel %vm562, %v936, %v942
        %v951 = vmul.f32 %v949, %v570
        %v952 = vmul.f32 %v943, %v574
        %v953 = vmul.f32 %v950, %v570
        %v954 = vmul.f32 %v944, %v574
        %955 = vrot.lane.b32.xlu0 %v800, 15
        %v956 = vpop.permute.xlu0 %955
        %957 = vrot.lane.b32.xlu0 %v802, 15
        %v958 = vpop.permute.xlu0 %957
        %961 = vrot.lane.b32.xlu0 %v799, 15
        %v962 = vpop.permute.xlu0 %961
        %963 = vrot.lane.b32.xlu0 %v801, 15
        %v964 = vpop.permute.xlu0 %963
        %v965 = vsel %vm582, %v962, %v956
        %v966 = vsel %vm582, %v964, %v958
        %v971 = vsel %vm582, %v956, %v962
        %v972 = vsel %vm582, %v958, %v964
        %v973 = vmul.f32 %v971, %v590
        %v974 = vmul.f32 %v965, %v594
        %v975 = vmul.f32 %v972, %v590
        %v976 = vmul.f32 %v966, %v594
        %977 = vrot.lane.b32.xlu0 %v800, 1
        %v978 = vpop.permute.xlu0 %977
        %979 = vrot.lane.b32.xlu0 %v802, 1
        %v980 = vpop.permute.xlu0 %979
        %983 = vrot.lane.b32.xlu0 %v799, 1
        %v984 = vpop.permute.xlu0 %983
        %985 = vrot.lane.b32.xlu0 %v801, 1
        %v986 = vpop.permute.xlu0 %985
        %v987 = vsel %vm602, %v984, %v978
        %v988 = vsel %vm602, %v986, %v980
        %v993 = vsel %vm602, %v978, %v984
        %v994 = vsel %vm602, %v980, %v986
        %v995 = vmul.f32 %v993, %v610
        %v996 = vmul.f32 %v987, %v614
        %v997 = vmul.f32 %v994, %v610
        %v998 = vmul.f32 %v988, %v614
        %999 = vrot.lane.b32.xlu0 %v799, 127
        %v1000 = vpop.permute.xlu0 %999
        %1001 = vrot.lane.b32.xlu0 %v800, 127
        %v1002 = vpop.permute.xlu0 %1001
        %1003 = vrot.lane.b32.xlu0 %v801, 127
        %v1004 = vpop.permute.xlu0 %1003
        %1005 = vrot.lane.b32.xlu0 %v802, 127
        %v1006 = vpop.permute.xlu0 %1005
        %v1007 = vsel %vm621, %v1000, %v1002
        %v1008 = vsel %vm621, %v1004, %v1006
        %v1015 = vsel %vm621, %v1002, %v1000
        %v1016 = vsel %vm621, %v1006, %v1004
        %v1017 = vmul.f32 %v1007, %v630
        %v1018 = vmul.f32 %v1015, %v634
        %v1019 = vmul.f32 %v1008, %v630
        %v1020 = vmul.f32 %v1016, %v634
        %1021 = vrot.lane.b32.xlu0 %v799, 113
        %v1022 = vpop.permute.xlu0 %1021
        %1023 = vrot.lane.b32.xlu0 %v800, 113
        %v1024 = vpop.permute.xlu0 %1023
        %1025 = vrot.lane.b32.xlu0 %v801, 113
        %v1026 = vpop.permute.xlu0 %1025
        %1027 = vrot.lane.b32.xlu0 %v802, 113
        %v1028 = vpop.permute.xlu0 %1027
        %v1029 = vsel %vm641, %v1022, %v1024
        %v1030 = vsel %vm641, %v1026, %v1028
        %v1037 = vsel %vm641, %v1024, %v1022
        %v1038 = vsel %vm641, %v1028, %v1026
        %v1039 = vmul.f32 %v1029, %v650
        %v1040 = vmul.f32 %v1037, %v654
        %v1041 = vmul.f32 %v1030, %v650
        %v1042 = vmul.f32 %v1038, %v654
        %1043 = vrot.lane.b32.xlu0 %v799, 112
        %v1044 = vpop.permute.xlu0 %1043
        %1045 = vrot.lane.b32.xlu0 %v800, 112
        %v1046 = vpop.permute.xlu0 %1045
        %1047 = vrot.lane.b32.xlu0 %v801, 112
        %v1048 = vpop.permute.xlu0 %1047
        %1049 = vrot.lane.b32.xlu0 %v802, 112
        %v1050 = vpop.permute.xlu0 %1049
        %v1051 = vsel %vm661, %v1044, %v1046
        %v1052 = vsel %vm661, %v1048, %v1050
        %v1059 = vsel %vm661, %v1046, %v1044
        %v1060 = vsel %vm661, %v1050, %v1048
        %v1061 = vmul.f32 %v1051, %v670
        %v1062 = vmul.f32 %v1059, %v674
        %v1063 = vmul.f32 %v1052, %v670
        %v1064 = vmul.f32 %v1060, %v674
        %1065 = vrot.lane.b32.xlu0 %v799, 111
        %v1066 = vpop.permute.xlu0 %1065
        %1067 = vrot.lane.b32.xlu0 %v800, 111
        %v1068 = vpop.permute.xlu0 %1067
        %1069 = vrot.lane.b32.xlu0 %v801, 111
        %v1070 = vpop.permute.xlu0 %1069
        %1071 = vrot.lane.b32.xlu0 %v802, 111
        %v1072 = vpop.permute.xlu0 %1071
        %v1073 = vsel %vm681, %v1066, %v1068
        %v1074 = vsel %vm681, %v1070, %v1072
        %v1081 = vsel %vm681, %v1068, %v1066
        %v1082 = vsel %vm681, %v1072, %v1070
        %v1083 = vmul.f32 %v1073, %v690
        %v1084 = vmul.f32 %v1081, %v694
        %v1085 = vmul.f32 %v1074, %v690
        %v1086 = vmul.f32 %v1082, %v694
        %1088 = vset.pattern.permute.xlu0 0
        %1089 = vperm.xlu0 %1088, %v905
        %v1090 = vpop.permute.xlu0 %1089
        %1093 = vset.pattern.permute.xlu0 0
        %1094 = vperm.xlu0 %1093, %v906
        %v1095 = vpop.permute.xlu0 %1094
        %v1098 = vsel %vm562, %v902, 0
        %v1101 = vsel %vm562, %v904, 0
        %1103 = vmatprep.subr.mxu0 %v930
        %1104 = vmatpush1.msra.mxu0 %v929
        %1105 = vmatprep.subr.mxu0 %v932
        %1106 = vmatpush1.msra.mxu0 %v931
        %1107 = vmatprep.subr.mxu0 %v952
        %1108 = vmatpush1.msra.mxu0 %v951
        %1109 = vmatprep.subr.mxu0 %v954
        %1110 = vmatpush1.msra.mxu0 %v953
        %1111 = vmatprep.subr.mxu0 %v974
        %1112 = vmatpush1.msra.mxu0 %v973
        %1113 = vmatprep.subr.mxu0 %v976
        %1114 = vmatpush1.msra.mxu0 %v975
        %1115 = vmatprep.subr.mxu0 %v996
        %1116 = vmatpush1.msra.mxu0 %v995
        %1117 = vmatprep.subr.mxu0 %v998
        %1118 = vmatpush1.msra.mxu0 %v997
        %1119 = vmatprep.subr.mxu0 %v800
        %1120 = vmatpush1.msra.mxu0 %v799
        %1121 = vmatprep.subr.mxu0 %v802
        %1122 = vmatpush1.msra.mxu0 %v801
        %1123 = vmatprep.subr.mxu0 %v1018
        %1124 = vmatpush1.msra.mxu0 %v1017
        %1125 = vmatprep.subr.mxu0 %v1020
        %1126 = vmatpush1.msra.mxu0 %v1019
        %1127 = vmatprep.subr.mxu0 %v1040
        %1128 = vmatpush1.msra.mxu0 %v1039
        %1129 = vmatprep.subr.mxu0 %v1042
        %1130 = vmatpush1.msra.mxu0 %v1041
        %1131 = vmatprep.subr.mxu0 %v1062
        %1132 = vmatpush1.msra.mxu0 %v1061
        %1133 = vmatprep.subr.mxu0 %v1064
        %1134 = vmatpush1.msra.mxu0 %v1063
        %1135 = vmatprep.subr.mxu0 %v1084
        %1136 = vmatpush1.msra.mxu0 %v1083
        %1137 = vmatprep.subr.mxu0 %v1086
        %1138 = vmatpush1.msra.mxu0 %v1085
        %1139 = vmatprep.subr.mxu0 0.0
        %1140 = vmatpush1.msra.mxu0 0.0
        %1141 = vmatprep.subr.mxu0 0.0
        %1142 = vmatpush1.msra.mxu0 0.0
        %1143 = vmatprep.subr.mxu0 0.0
        %1144 = vmatpush1.msra.mxu0 0.0
        %1145 = vmatprep.subr.mxu0 0.0
        %1146 = vmatpush1.msra.mxu0 0.0
        %1147 = vmatprep.subr.mxu0 0.0
        %1148 = vmatpush1.msra.mxu0 0.0
        %1149 = vmatprep.subr.mxu0 0.0
        %1150 = vmatpush1.msra.mxu0 0.0
        %1151 = vmatprep.subr.mxu0 0.0
        %1152 = vmatpush1.msra.mxu0 0.0
        %1153 = vmatprep.subr.mxu0 0.0
        %1154 = vmatpush1.msra.mxu0 0.0
        %1155 = vmatprep.subr.mxu0 0.0
        %1156 = vmatpush1.msra.mxu0 0.0
        %1157 = vmatprep.subr.mxu0 0.0
        %1158 = vmatpush1.msra.mxu0 0.0
        %1159 = vmatprep.subr.mxu0 0.0
        %1160 = vmatpush1.msra.mxu0 0.0
        %1161 = vmatprep.subr.mxu0 0.0
        %1162 = vmatpush1.msra.mxu0 0.0
        %1163 = vmatprep.subr.mxu0 0.0
        %1164 = vmatpush1.msra.mxu0 0.0
        %1165 = vmatprep.subr.mxu0 0.0
        %1166 = vmatpush1.msra.mxu0 0.0
        %1167 = vmatprep.mubr.f32.mxu0 %v1098
        %1168 = vmatmul.mubr.f32.gmra.mrb[0].mxu0 %v901
        %v1169 = vpop.f32.mrb[0].mxu0
        %v1170 = vadd.f32 %v1090, %v1169
        %v1171 = vpop.f32.mrb[0].mxu0
        %v1172 = vadd.f32 %v1090, %v1171
        %1173 = vmatprep.mubr.f32.mxu0 %v1101
        %1174 = vmatmul.mubr.f32.gmra.mrb[0].mxu0 %v903
        %v1175 = vpop.f32.mrb[0].mxu0
        %v1176 = vadd.f32 %v1095, %v1175
        %v1177 = vpop.f32.mrb[0].mxu0
        %v1178 = vadd.f32 %v1095, %v1177
        %1179 = vdwg.mxu0
        %v1180 = vadd.f32 %v1170, %v891
        %v1181 = vadd.f32 %v1172, %v893
        %v1182 = vadd.f32 %v1176, %v897
        %v1183 = vadd.f32 %v1178, %v899
        %vm1184 = vcmp.ge.f32.partialorder %v1180, 0.0
        %vm1185 = vcmp.ge.f32.partialorder %v1181, 0.0
        %vm1186 = vcmp.ge.f32.partialorder %v1182, 0.0
        %vm1187 = vcmp.ge.f32.partialorder %v1183, 0.0
        %v1188 = vmul.f32 %v1180, 0.1
        %v1189 = vmul.f32 %v1181, 0.1
        %v1190 = vmul.f32 %v1182, 0.1
        %v1191 = vmul.f32 %v1183, 0.1
        %v1192 = vsel %vm1184, %v1180, %v1188
        %v1193 = vsel %vm1185, %v1181, %v1189
        %v1194 = vsel %vm1186, %v1182, %v1190
        %v1195 = vsel %vm1187, %v1183, %v1191
        loop: start=0, step=1, limit=19
        $region89: #{heatmap_model_forward.1} parent=79 // loop_pre_header
          _
        $region90: #{heatmap_model_forward.1} parent=79 // loop_header
          %s1197 = sphi 0, %s1201
          %p1198 = scmp.ge.s32.totalorder %s1197, 19
          %v1202 = vphi %v1192, %v1796
          %v1203 = vphi %v1193, %v1797
          %v1204 = vphi %v1194, %v1798
          %v1205 = vphi %v1195, %v1799
        $region91: #{heatmap_model_forward.1} parent=79 // loop_header_branch
          %1200 = sbr.rel (%p1198) target = $region95
        $region92: #{heatmap_model_forward.1} parent=79 // loop_body
          %s1206 = smul.u32 %s1197, 4
          %s1207 = smul.addr %s1206, 8
          %s1208 = scalar_lea.vmem %s8, %s1207
          %v1209 = vld [vmem:[%s1208] sm:$0xff]
          %v1210 = vld [vmem:[%s1208 + $0x8] sm:$0xff]
          %v1211 = vld [vmem:[%s1208 + $0x10] sm:$0xff]
          %v1212 = vld [vmem:[%s1208 + $0x18] sm:$0xff]
          %s1213 = smul.u32 %s1197, 16
          %s1214 = scalar_lea.vmem %s9, %s1213
          %v1215 = vld [vmem:[%s1214] sm:$0xff]
          %v1216 = vld [vmem:[%s1214 + $0x8] sm:$0xff]
          %1219 = vrot.lane.b32.xlu0 %v1203, 17
          %v1220 = vpop.permute.xlu0 %1219
          %1221 = vrot.lane.b32.xlu0 %v1205, 17
          %v1222 = vpop.permute.xlu0 %1221
          %1227 = vrot.lane.b32.xlu0 %v1202, 17
          %v1228 = vpop.permute.xlu0 %1227
          %1229 = vrot.lane.b32.xlu0 %v1204, 17
          %v1230 = vpop.permute.xlu0 %1229
          %v1231 = vsel %vm542, %v1228, %v1220
          %v1232 = vsel %vm542, %v1230, %v1222
          %v1237 = vsel %vm542, %v1220, %v1228
          %v1238 = vsel %vm542, %v1222, %v1230
          %v1239 = vmul.f32 %v1237, %v550
          %v1240 = vmul.f32 %v1231, %v554
          %v1241 = vmul.f32 %v1238, %v550
          %v1242 = vmul.f32 %v1232, %v554
          %1243 = vrot.lane.b32.xlu0 %v1203, 16
          %v1244 = vpop.permute.xlu0 %1243
          %1245 = vrot.lane.b32.xlu0 %v1205, 16
          %v1246 = vpop.permute.xlu0 %1245
          %1249 = vrot.lane.b32.xlu0 %v1202, 16
          %v1250 = vpop.permute.xlu0 %1249
          %1251 = vrot.lane.b32.xlu0 %v1204, 16
          %v1252 = vpop.permute.xlu0 %1251
          %v1253 = vsel %vm562, %v1250, %v1244
          %v1254 = vsel %vm562, %v1252, %v1246
          %v1259 = vsel %vm562, %v1244, %v1250
          %v1260 = vsel %vm562, %v1246, %v1252
          %v1261 = vmul.f32 %v1259, %v570
          %v1262 = vmul.f32 %v1253, %v574
          %v1263 = vmul.f32 %v1260, %v570
          %v1264 = vmul.f32 %v1254, %v574
          %1265 = vrot.lane.b32.xlu0 %v1203, 15
          %v1266 = vpop.permute.xlu0 %1265
          %1267 = vrot.lane.b32.xlu0 %v1205, 15
          %v1268 = vpop.permute.xlu0 %1267
          %1271 = vrot.lane.b32.xlu0 %v1202, 15
          %v1272 = vpop.permute.xlu0 %1271
          %1273 = vrot.lane.b32.xlu0 %v1204, 15
          %v1274 = vpop.permute.xlu0 %1273
          %v1275 = vsel %vm582, %v1272, %v1266
          %v1276 = vsel %vm582, %v1274, %v1268
          %v1281 = vsel %vm582, %v1266, %v1272
          %v1282 = vsel %vm582, %v1268, %v1274
          %v1283 = vmul.f32 %v1281, %v590
          %v1284 = vmul.f32 %v1275, %v594
          %v1285 = vmul.f32 %v1282, %v590
          %v1286 = vmul.f32 %v1276, %v594
          %1287 = vrot.lane.b32.xlu0 %v1203, 1
          %v1288 = vpop.permute.xlu0 %1287
          %1289 = vrot.lane.b32.xlu0 %v1205, 1
          %v1290 = vpop.permute.xlu0 %1289
          %1293 = vrot.lane.b32.xlu0 %v1202, 1
          %v1294 = vpop.permute.xlu0 %1293
          %1295 = vrot.lane.b32.xlu0 %v1204, 1
          %v1296 = vpop.permute.xlu0 %1295
          %v1297 = vsel %vm602, %v1294, %v1288
          %v1298 = vsel %vm602, %v1296, %v1290
          %v1303 = vsel %vm602, %v1288, %v1294
          %v1304 = vsel %vm602, %v1290, %v1296
          %v1305 = vmul.f32 %v1303, %v610
          %v1306 = vmul.f32 %v1297, %v614
          %v1307 = vmul.f32 %v1304, %v610
          %v1308 = vmul.f32 %v1298, %v614
          %1309 = vrot.lane.b32.xlu0 %v1202, 127
          %v1310 = vpop.permute.xlu0 %1309
          %1311 = vrot.lane.b32.xlu0 %v1203, 127
          %v1312 = vpop.permute.xlu0 %1311
          %1313 = vrot.lane.b32.xlu0 %v1204, 127
          %v1314 = vpop.permute.xlu0 %1313
          %1315 = vrot.lane.b32.xlu0 %v1205, 127
          %v1316 = vpop.permute.xlu0 %1315
          %v1317 = vsel %vm621, %v1310, %v1312
          %v1318 = vsel %vm621, %v1314, %v1316
          %v1325 = vsel %vm621, %v1312, %v1310
          %v1326 = vsel %vm621, %v1316, %v1314
          %v1327 = vmul.f32 %v1317, %v630
          %v1328 = vmul.f32 %v1325, %v634
          %v1329 = vmul.f32 %v1318, %v630
          %v1330 = vmul.f32 %v1326, %v634
          %1331 = vrot.lane.b32.xlu0 %v1202, 113
          %v1332 = vpop.permute.xlu0 %1331
          %1333 = vrot.lane.b32.xlu0 %v1203, 113
          %v1334 = vpop.permute.xlu0 %1333
          %1335 = vrot.lane.b32.xlu0 %v1204, 113
          %v1336 = vpop.permute.xlu0 %1335
          %1337 = vrot.lane.b32.xlu0 %v1205, 113
          %v1338 = vpop.permute.xlu0 %1337
          %v1339 = vsel %vm641, %v1332, %v1334
          %v1340 = vsel %vm641, %v1336, %v1338
          %v1347 = vsel %vm641, %v1334, %v1332
          %v1348 = vsel %vm641, %v1338, %v1336
          %v1349 = vmul.f32 %v1339, %v650
          %v1350 = vmul.f32 %v1347, %v654
          %v1351 = vmul.f32 %v1340, %v650
          %v1352 = vmul.f32 %v1348, %v654
          %1353 = vrot.lane.b32.xlu0 %v1202, 112
          %v1354 = vpop.permute.xlu0 %1353
          %1355 = vrot.lane.b32.xlu0 %v1203, 112
          %v1356 = vpop.permute.xlu0 %1355
          %1357 = vrot.lane.b32.xlu0 %v1204, 112
          %v1358 = vpop.permute.xlu0 %1357
          %1359 = vrot.lane.b32.xlu0 %v1205, 112
          %v1360 = vpop.permute.xlu0 %1359
          %v1361 = vsel %vm661, %v1354, %v1356
          %v1362 = vsel %vm661, %v1358, %v1360
          %v1369 = vsel %vm661, %v1356, %v1354
          %v1370 = vsel %vm661, %v1360, %v1358
          %v1371 = vmul.f32 %v1361, %v670
          %v1372 = vmul.f32 %v1369, %v674
          %v1373 = vmul.f32 %v1362, %v670
          %v1374 = vmul.f32 %v1370, %v674
          %1375 = vrot.lane.b32.xlu0 %v1202, 111
          %v1376 = vpop.permute.xlu0 %1375
          %1377 = vrot.lane.b32.xlu0 %v1203, 111
          %v1378 = vpop.permute.xlu0 %1377
          %1379 = vrot.lane.b32.xlu0 %v1204, 111
          %v1380 = vpop.permute.xlu0 %1379
          %1381 = vrot.lane.b32.xlu0 %v1205, 111
          %v1382 = vpop.permute.xlu0 %1381
          %v1383 = vsel %vm681, %v1376, %v1378
          %v1384 = vsel %vm681, %v1380, %v1382
          %v1391 = vsel %vm681, %v1378, %v1376
          %v1392 = vsel %vm681, %v1382, %v1380
          %v1393 = vmul.f32 %v1383, %v690
          %v1394 = vmul.f32 %v1391, %v694
          %v1395 = vmul.f32 %v1384, %v690
          %v1396 = vmul.f32 %v1392, %v694
          %1398 = vset.pattern.permute.xlu0 0
          %1399 = vperm.xlu0 %1398, %v1215
          %v1400 = vpop.permute.xlu0 %1399
          %1403 = vset.pattern.permute.xlu0 0
          %1404 = vperm.xlu0 %1403, %v1216
          %v1405 = vpop.permute.xlu0 %1404
          %v1408 = vsel %vm562, %v1210, 0
          %v1411 = vsel %vm562, %v1212, 0
          %1413 = vmatprep.subr.mxu0 %v1240
          %1414 = vmatpush1.msra.mxu0 %v1239
          %1415 = vmatprep.subr.mxu0 %v1242
          %1416 = vmatpush1.msra.mxu0 %v1241
          %1417 = vmatprep.subr.mxu0 %v1262
          %1418 = vmatpush1.msra.mxu0 %v1261
          %1419 = vmatprep.subr.mxu0 %v1264
          %1420 = vmatpush1.msra.mxu0 %v1263
          %1421 = vmatprep.subr.mxu0 %v1284
          %1422 = vmatpush1.msra.mxu0 %v1283
          %1423 = vmatprep.subr.mxu0 %v1286
          %1424 = vmatpush1.msra.mxu0 %v1285
          %1425 = vmatprep.subr.mxu0 %v1306
          %1426 = vmatpush1.msra.mxu0 %v1305
          %1427 = vmatprep.subr.mxu0 %v1308
          %1428 = vmatpush1.msra.mxu0 %v1307
          %1429 = vmatprep.subr.mxu0 %v1203
          %1430 = vmatpush1.msra.mxu0 %v1202
          %1431 = vmatprep.subr.mxu0 %v1205
          %1432 = vmatpush1.msra.mxu0 %v1204
          %1433 = vmatprep.subr.mxu0 %v1328
          %1434 = vmatpush1.msra.mxu0 %v1327
          %1435 = vmatprep.subr.mxu0 %v1330
          %1436 = vmatpush1.msra.mxu0 %v1329
          %1437 = vmatprep.subr.mxu0 %v1350
          %1438 = vmatpush1.msra.mxu0 %v1349
          %1439 = vmatprep.subr.mxu0 %v1352
          %1440 = vmatpush1.msra.mxu0 %v1351
          %1441 = vmatprep.subr.mxu0 %v1372
          %1442 = vmatpush1.msra.mxu0 %v1371
          %1443 = vmatprep.subr.mxu0 %v1374
          %1444 = vmatpush1.msra.mxu0 %v1373
          %1445 = vmatprep.subr.mxu0 %v1394
          %1446 = vmatpush1.msra.mxu0 %v1393
          %1447 = vmatprep.subr.mxu0 %v1396
          %1448 = vmatpush1.msra.mxu0 %v1395
          %1449 = vmatprep.subr.mxu0 0.0
          %1450 = vmatpush1.msra.mxu0 0.0
          %1451 = vmatprep.subr.mxu0 0.0
          %1452 = vmatpush1.msra.mxu0 0.0
          %1453 = vmatprep.subr.mxu0 0.0
          %1454 = vmatpush1.msra.mxu0 0.0
          %1455 = vmatprep.subr.mxu0 0.0
          %1456 = vmatpush1.msra.mxu0 0.0
          %1457 = vmatprep.subr.mxu0 0.0
          %1458 = vmatpush1.msra.mxu0 0.0
          %1459 = vmatprep.subr.mxu0 0.0
          %1460 = vmatpush1.msra.mxu0 0.0
          %1461 = vmatprep.subr.mxu0 0.0
          %1462 = vmatpush1.msra.mxu0 0.0
          %1463 = vmatprep.subr.mxu0 0.0
          %1464 = vmatpush1.msra.mxu0 0.0
          %1465 = vmatprep.subr.mxu0 0.0
          %1466 = vmatpush1.msra.mxu0 0.0
          %1467 = vmatprep.subr.mxu0 0.0
          %1468 = vmatpush1.msra.mxu0 0.0
          %1469 = vmatprep.subr.mxu0 0.0
          %1470 = vmatpush1.msra.mxu0 0.0
          %1471 = vmatprep.subr.mxu0 0.0
          %1472 = vmatpush1.msra.mxu0 0.0
          %1473 = vmatprep.subr.mxu0 0.0
          %1474 = vmatpush1.msra.mxu0 0.0
          %1475 = vmatprep.subr.mxu0 0.0
          %1476 = vmatpush1.msra.mxu0 0.0
          %1477 = vmatprep.mubr.f32.mxu0 %v1408
          %1478 = vmatmul.mubr.f32.gmra.mrb[0].mxu0 %v1209
          %v1479 = vpop.f32.mrb[0].mxu0
          %v1480 = vadd.f32 %v1400, %v1479
          %v1481 = vpop.f32.mrb[0].mxu0
          %v1482 = vadd.f32 %v1400, %v1481
          %1483 = vmatprep.mubr.f32.mxu0 %v1411
          %1484 = vmatmul.mubr.f32.gmra.mrb[0].mxu0 %v1211
          %v1485 = vpop.f32.mrb[0].mxu0
          %v1486 = vadd.f32 %v1405, %v1485
          %v1487 = vpop.f32.mrb[0].mxu0
          %v1488 = vadd.f32 %v1405, %v1487
          %1489 = vdwg.mxu0
          %vm1490 = vcmp.ge.f32.partialorder %v1480, 0.0
          %vm1491 = vcmp.ge.f32.partialorder %v1482, 0.0
          %vm1492 = vcmp.ge.f32.partialorder %v1486, 0.0
          %vm1493 = vcmp.ge.f32.partialorder %v1488, 0.0
          %v1494 = vmul.f32 %v1480, 0.1
          %v1495 = vmul.f32 %v1482, 0.1
          %v1496 = vmul.f32 %v1486, 0.1
          %v1497 = vmul.f32 %v1488, 0.1
          %v1498 = vsel %vm1490, %v1480, %v1494
          %v1499 = vsel %vm1491, %v1482, %v1495
          %v1500 = vsel %vm1492, %v1486, %v1496
          %v1501 = vsel %vm1493, %v1488, %v1497
          %s1502 = smul.addr %s1206, 8
          %s1503 = scalar_lea.vmem [#allocation3], %s1502
          %v1504 = vld [vmem:[%s1503] sm:$0xff]
          %v1505 = vld [vmem:[%s1503 + $0x8] sm:$0xff]
          %v1506 = vld [vmem:[%s1503 + $0x10] sm:$0xff]
          %v1507 = vld [vmem:[%s1503 + $0x18] sm:$0xff]
          %s1508 = scalar_lea.vmem %s11, %s1213
          %v1509 = vld [vmem:[%s1508] sm:$0xff]
          %v1510 = vld [vmem:[%s1508 + $0x8] sm:$0xff]
          %1513 = vrot.lane.b32.xlu0 %v1499, 17
          %v1514 = vpop.permute.xlu0 %1513
          %1515 = vrot.lane.b32.xlu0 %v1501, 17
          %v1516 = vpop.permute.xlu0 %1515
          %1521 = vrot.lane.b32.xlu0 %v1498, 17
          %v1522 = vpop.permute.xlu0 %1521
          %1523 = vrot.lane.b32.xlu0 %v1500, 17
          %v1524 = vpop.permute.xlu0 %1523
          %v1525 = vsel %vm542, %v1522, %v1514
          %v1526 = vsel %vm542, %v1524, %v1516
          %v1531 = vsel %vm542, %v1514, %v1522
          %v1532 = vsel %vm542, %v1516, %v1524
          %v1533 = vmul.f32 %v1531, %v550
          %v1534 = vmul.f32 %v1525, %v554
          %v1535 = vmul.f32 %v1532, %v550
          %v1536 = vmul.f32 %v1526, %v554
          %1537 = vrot.lane.b32.xlu0 %v1499, 16
          %v1538 = vpop.permute.xlu0 %1537
          %1539 = vrot.lane.b32.xlu0 %v1501, 16
          %v1540 = vpop.permute.xlu0 %1539
          %1543 = vrot.lane.b32.xlu0 %v1498, 16
          %v1544 = vpop.permute.xlu0 %1543
          %1545 = vrot.lane.b32.xlu0 %v1500, 16
          %v1546 = vpop.permute.xlu0 %1545
          %v1547 = vsel %vm562, %v1544, %v1538
          %v1548 = vsel %vm562, %v1546, %v1540
          %v1553 = vsel %vm562, %v1538, %v1544
          %v1554 = vsel %vm562, %v1540, %v1546
          %v1555 = vmul.f32 %v1553, %v570
          %v1556 = vmul.f32 %v1547, %v574
          %v1557 = vmul.f32 %v1554, %v570
          %v1558 = vmul.f32 %v1548, %v574
          %1559 = vrot.lane.b32.xlu0 %v1499, 15
          %v1560 = vpop.permute.xlu0 %1559
          %1561 = vrot.lane.b32.xlu0 %v1501, 15
          %v1562 = vpop.permute.xlu0 %1561
          %1565 = vrot.lane.b32.xlu0 %v1498, 15
          %v1566 = vpop.permute.xlu0 %1565
          %1567 = vrot.lane.b32.xlu0 %v1500, 15
          %v1568 = vpop.permute.xlu0 %1567
          %v1569 = vsel %vm582, %v1566, %v1560
          %v1570 = vsel %vm582, %v1568, %v1562
          %v1575 = vsel %vm582, %v1560, %v1566
          %v1576 = vsel %vm582, %v1562, %v1568
          %v1577 = vmul.f32 %v1575, %v590
          %v1578 = vmul.f32 %v1569, %v594
          %v1579 = vmul.f32 %v1576, %v590
          %v1580 = vmul.f32 %v1570, %v594
          %1581 = vrot.lane.b32.xlu0 %v1499, 1
          %v1582 = vpop.permute.xlu0 %1581
          %1583 = vrot.lane.b32.xlu0 %v1501, 1
          %v1584 = vpop.permute.xlu0 %1583
          %1587 = vrot.lane.b32.xlu0 %v1498, 1
          %v1588 = vpop.permute.xlu0 %1587
          %1589 = vrot.lane.b32.xlu0 %v1500, 1
          %v1590 = vpop.permute.xlu0 %1589
          %v1591 = vsel %vm602, %v1588, %v1582
          %v1592 = vsel %vm602, %v1590, %v1584
          %v1597 = vsel %vm602, %v1582, %v1588
          %v1598 = vsel %vm602, %v1584, %v1590
          %v1599 = vmul.f32 %v1597, %v610
          %v1600 = vmul.f32 %v1591, %v614
          %v1601 = vmul.f32 %v1598, %v610
          %v1602 = vmul.f32 %v1592, %v614
          %1603 = vrot.lane.b32.xlu0 %v1498, 127
          %v1604 = vpop.permute.xlu0 %1603
          %1605 = vrot.lane.b32.xlu0 %v1499, 127
          %v1606 = vpop.permute.xlu0 %1605
          %1607 = vrot.lane.b32.xlu0 %v1500, 127
          %v1608 = vpop.permute.xlu0 %1607
          %1609 = vrot.lane.b32.xlu0 %v1501, 127
          %v1610 = vpop.permute.xlu0 %1609
          %v1611 = vsel %vm621, %v1604, %v1606
          %v1612 = vsel %vm621, %v1608, %v1610
          %v1619 = vsel %vm621, %v1606, %v1604
          %v1620 = vsel %vm621, %v1610, %v1608
          %v1621 = vmul.f32 %v1611, %v630
          %v1622 = vmul.f32 %v1619, %v634
          %v1623 = vmul.f32 %v1612, %v630
          %v1624 = vmul.f32 %v1620, %v634
          %1625 = vrot.lane.b32.xlu0 %v1498, 113
          %v1626 = vpop.permute.xlu0 %1625
          %1627 = vrot.lane.b32.xlu0 %v1499, 113
          %v1628 = vpop.permute.xlu0 %1627
          %1629 = vrot.lane.b32.xlu0 %v1500, 113
          %v1630 = vpop.permute.xlu0 %1629
          %1631 = vrot.lane.b32.xlu0 %v1501, 113
          %v1632 = vpop.permute.xlu0 %1631
          %v1633 = vsel %vm641, %v1626, %v1628
          %v1634 = vsel %vm641, %v1630, %v1632
          %v1641 = vsel %vm641, %v1628, %v1626
          %v1642 = vsel %vm641, %v1632, %v1630
          %v1643 = vmul.f32 %v1633, %v650
          %v1644 = vmul.f32 %v1641, %v654
          %v1645 = vmul.f32 %v1634, %v650
          %v1646 = vmul.f32 %v1642, %v654
          %1647 = vrot.lane.b32.xlu0 %v1498, 112
          %v1648 = vpop.permute.xlu0 %1647
          %1649 = vrot.lane.b32.xlu0 %v1499, 112
          %v1650 = vpop.permute.xlu0 %1649
          %1651 = vrot.lane.b32.xlu0 %v1500, 112
          %v1652 = vpop.permute.xlu0 %1651
          %1653 = vrot.lane.b32.xlu0 %v1501, 112
          %v1654 = vpop.permute.xlu0 %1653
          %v1655 = vsel %vm661, %v1648, %v1650
          %v1656 = vsel %vm661, %v1652, %v1654
          %v1663 = vsel %vm661, %v1650, %v1648
          %v1664 = vsel %vm661, %v1654, %v1652
          %v1665 = vmul.f32 %v1655, %v670
          %v1666 = vmul.f32 %v1663, %v674
          %v1667 = vmul.f32 %v1656, %v670
          %v1668 = vmul.f32 %v1664, %v674
          %1669 = vrot.lane.b32.xlu0 %v1498, 111
          %v1670 = vpop.permute.xlu0 %1669
          %1671 = vrot.lane.b32.xlu0 %v1499, 111
          %v1672 = vpop.permute.xlu0 %1671
          %1673 = vrot.lane.b32.xlu0 %v1500, 111
          %v1674 = vpop.permute.xlu0 %1673
          %1675 = vrot.lane.b32.xlu0 %v1501, 111
          %v1676 = vpop.permute.xlu0 %1675
          %v1677 = vsel %vm681, %v1670, %v1672
          %v1678 = vsel %vm681, %v1674, %v1676
          %v1685 = vsel %vm681, %v1672, %v1670
          %v1686 = vsel %vm681, %v1676, %v1674
          %v1687 = vmul.f32 %v1677, %v690
          %v1688 = vmul.f32 %v1685, %v694
          %v1689 = vmul.f32 %v1678, %v690
          %v1690 = vmul.f32 %v1686, %v694
          %1692 = vset.pattern.permute.xlu0 0
          %1693 = vperm.xlu0 %1692, %v1509
          %v1694 = vpop.permute.xlu0 %1693
          %1697 = vset.pattern.permute.xlu0 0
          %1698 = vperm.xlu0 %1697, %v1510
          %v1699 = vpop.permute.xlu0 %1698
          %v1702 = vsel %vm562, %v1505, 0
          %v1705 = vsel %vm562, %v1507, 0
          %1707 = vmatprep.subr.mxu0 %v1534
          %1708 = vmatpush1.msra.mxu0 %v1533
          %1709 = vmatprep.subr.mxu0 %v1536
          %1710 = vmatpush1.msra.mxu0 %v1535
          %1711 = vmatprep.subr.mxu0 %v1556
          %1712 = vmatpush1.msra.mxu0 %v1555
          %1713 = vmatprep.subr.mxu0 %v1558
          %1714 = vmatpush1.msra.mxu0 %v1557
          %1715 = vmatprep.subr.mxu0 %v1578
          %1716 = vmatpush1.msra.mxu0 %v1577
          %1717 = vmatprep.subr.mxu0 %v1580
          %1718 = vmatpush1.msra.mxu0 %v1579
          %1719 = vmatprep.subr.mxu0 %v1600
          %1720 = vmatpush1.msra.mxu0 %v1599
          %1721 = vmatprep.subr.mxu0 %v1602
          %1722 = vmatpush1.msra.mxu0 %v1601
          %1723 = vmatprep.subr.mxu0 %v1499
          %1724 = vmatpush1.msra.mxu0 %v1498
          %1725 = vmatprep.subr.mxu0 %v1501
          %1726 = vmatpush1.msra.mxu0 %v1500
          %1727 = vmatprep.subr.mxu0 %v1622
          %1728 = vmatpush1.msra.mxu0 %v1621
          %1729 = vmatprep.subr.mxu0 %v1624
          %1730 = vmatpush1.msra.mxu0 %v1623
          %1731 = vmatprep.subr.mxu0 %v1644
          %1732 = vmatpush1.msra.mxu0 %v1643
          %1733 = vmatprep.subr.mxu0 %v1646
          %1734 = vmatpush1.msra.mxu0 %v1645
          %1735 = vmatprep.subr.mxu0 %v1666
          %1736 = vmatpush1.msra.mxu0 %v1665
          %1737 = vmatprep.subr.mxu0 %v1668
          %1738 = vmatpush1.msra.mxu0 %v1667
          %1739 = vmatprep.subr.mxu0 %v1688
          %1740 = vmatpush1.msra.mxu0 %v1687
          %1741 = vmatprep.subr.mxu0 %v1690
          %1742 = vmatpush1.msra.mxu0 %v1689
          %1743 = vmatprep.subr.mxu0 0.0
          %1744 = vmatpush1.msra.mxu0 0.0
          %1745 = vmatprep.subr.mxu0 0.0
          %1746 = vmatpush1.msra.mxu0 0.0
          %1747 = vmatprep.subr.mxu0 0.0
          %1748 = vmatpush1.msra.mxu0 0.0
          %1749 = vmatprep.subr.mxu0 0.0
          %1750 = vmatpush1.msra.mxu0 0.0
          %1751 = vmatprep.subr.mxu0 0.0
          %1752 = vmatpush1.msra.mxu0 0.0
          %1753 = vmatprep.subr.mxu0 0.0
          %1754 = vmatpush1.msra.mxu0 0.0
          %1755 = vmatprep.subr.mxu0 0.0
          %1756 = vmatpush1.msra.mxu0 0.0
          %1757 = vmatprep.subr.mxu0 0.0
          %1758 = vmatpush1.msra.mxu0 0.0
          %1759 = vmatprep.subr.mxu0 0.0
          %1760 = vmatpush1.msra.mxu0 0.0
          %1761 = vmatprep.subr.mxu0 0.0
          %1762 = vmatpush1.msra.mxu0 0.0
          %1763 = vmatprep.subr.mxu0 0.0
          %1764 = vmatpush1.msra.mxu0 0.0
          %1765 = vmatprep.subr.mxu0 0.0
          %1766 = vmatpush1.msra.mxu0 0.0
          %1767 = vmatprep.subr.mxu0 0.0
          %1768 = vmatpush1.msra.mxu0 0.0
          %1769 = vmatprep.subr.mxu0 0.0
          %1770 = vmatpush1.msra.mxu0 0.0
          %1771 = vmatprep.mubr.f32.mxu0 %v1702
          %1772 = vmatmul.mubr.f32.gmra.mrb[0].mxu0 %v1504
          %v1773 = vpop.f32.mrb[0].mxu0
          %v1774 = vadd.f32 %v1694, %v1773
          %v1775 = vpop.f32.mrb[0].mxu0
          %v1776 = vadd.f32 %v1694, %v1775
          %1777 = vmatprep.mubr.f32.mxu0 %v1705
          %1778 = vmatmul.mubr.f32.gmra.mrb[0].mxu0 %v1506
          %v1779 = vpop.f32.mrb[0].mxu0
          %v1780 = vadd.f32 %v1699, %v1779
          %v1781 = vpop.f32.mrb[0].mxu0
          %v1782 = vadd.f32 %v1699, %v1781
          %1783 = vdwg.mxu0
          %v1784 = vadd.f32 %v1774, %v1202
          %v1785 = vadd.f32 %v1776, %v1203
          %v1786 = vadd.f32 %v1780, %v1204
          %v1787 = vadd.f32 %v1782, %v1205
          %vm1788 = vcmp.ge.f32.partialorder %v1784, 0.0
          %vm1789 = vcmp.ge.f32.partialorder %v1785, 0.0
          %vm1790 = vcmp.ge.f32.partialorder %v1786, 0.0
          %vm1791 = vcmp.ge.f32.partialorder %v1787, 0.0
          %v1792 = vmul.f32 %v1784, 0.1
          %v1793 = vmul.f32 %v1785, 0.1
          %v1794 = vmul.f32 %v1786, 0.1
          %v1795 = vmul.f32 %v1787, 0.1
          %v1796 = vsel %vm1788, %v1784, %v1792
          %v1797 = vsel %vm1789, %v1785, %v1793
          %v1798 = vsel %vm1790, %v1786, %v1794
          %v1799 = vsel %vm1791, %v1787, %v1795
        $region93: #{heatmap_model_forward.1} parent=79 // loop_footer
          %s1201 = sadd.s32 1, %s1197
        $region94: #{heatmap_model_forward.1} parent=79 // loop_footer_branch
          %1196 = sbr.rel target = $region90
        $region95: #{heatmap_model_forward.1} parent=79 // loop_exit
          _
        %v1800 = vld [vmem:[%s12] sm:$0x1]
        %v1801 = vld [vmem:[#allocation2] sm:$0x1]
        %1803 = vset.pattern.permute.xlu0 0
        %1804 = vperm.xlu0 %1803, %v1801
        %v1805 = vpop.permute.xlu0 %1804
        %v1807 = vlaneseq
        %v1808 = vshrl.u32 %v1807, 7
        %v1809 = vsub.s32 0, %v1808
        %v1810 = vrot.slane %v1805, %v1809
        %v1812 = vsel %vm562, %v1800, 0
        %1814 = vmatprep.subr.mxu0 %v1203
        %1815 = vmatpush1.msra.mxu0 %v1202
        %1816 = vmatprep.subr.mxu0 %v1205
        %1817 = vmatpush1.msra.mxu0 %v1204
        %1818 = vmatprep.subr.mxu0 0.0
        %1819 = vmatpush1.msra.mxu0 0.0
        %1820 = vmatprep.subr.mxu0 0.0
        %1821 = vmatpush1.msra.mxu0 0.0
        %1822 = vmatprep.subr.mxu0 0.0
        %1823 = vmatpush1.msra.mxu0 0.0
        %1824 = vmatprep.subr.mxu0 0.0
        %1825 = vmatpush1.msra.mxu0 0.0
        %1826 = vmatprep.subr.mxu0 0.0
        %1827 = vmatpush1.msra.mxu0 0.0
        %1828 = vmatprep.subr.mxu0 0.0
        %1829 = vmatpush1.msra.mxu0 0.0
        %1830 = vmatprep.subr.mxu0 0.0
        %1831 = vmatpush1.msra.mxu0 0.0
        %1832 = vmatprep.subr.mxu0 0.0
        %1833 = vmatpush1.msra.mxu0 0.0
        %1834 = vmatprep.subr.mxu0 0.0
        %1835 = vmatpush1.msra.mxu0 0.0
        %1836 = vmatprep.subr.mxu0 0.0
        %1837 = vmatpush1.msra.mxu0 0.0
        %1838 = vmatprep.subr.mxu0 0.0
        %1839 = vmatpush1.msra.mxu0 0.0
        %1840 = vmatprep.subr.mxu0 0.0
        %1841 = vmatpush1.msra.mxu0 0.0
        %1842 = vmatprep.subr.mxu0 0.0
        %1843 = vmatpush1.msra.mxu0 0.0
        %1844 = vmatprep.subr.mxu0 0.0
        %1845 = vmatpush1.msra.mxu0 0.0
        %1846 = vmatprep.subr.mxu0 0.0
        %1847 = vmatpush1.msra.mxu0 0.0
        %1848 = vmatprep.subr.mxu0 0.0
        %1849 = vmatpush1.msra.mxu0 0.0
        %1850 = vmatprep.subr.mxu0 0.0
        %1851 = vmatpush1.msra.mxu0 0.0
        %1852 = vmatprep.subr.mxu0 0.0
        %1853 = vmatpush1.msra.mxu0 0.0
        %1854 = vmatprep.subr.mxu0 0.0
        %1855 = vmatpush1.msra.mxu0 0.0
        %1856 = vmatprep.subr.mxu0 0.0
        %1857 = vmatpush1.msra.mxu0 0.0
        %1858 = vmatprep.subr.mxu0 0.0
        %1859 = vmatpush1.msra.mxu0 0.0
        %1860 = vmatprep.subr.mxu0 0.0
        %1861 = vmatpush1.msra.mxu0 0.0
        %1862 = vmatprep.subr.mxu0 0.0
        %1863 = vmatpush1.msra.mxu0 0.0
        %1864 = vmatprep.subr.mxu0 0.0
        %1865 = vmatpush1.msra.mxu0 0.0
        %1866 = vmatprep.subr.mxu0 0.0
        %1867 = vmatpush1.msra.mxu0 0.0
        %1868 = vmatprep.subr.mxu0 0.0
        %1869 = vmatpush1.msra.mxu0 0.0
        %1870 = vmatprep.subr.mxu0 0.0
        %1871 = vmatpush1.msra.mxu0 0.0
        %1872 = vmatprep.subr.mxu0 0.0
        %1873 = vmatpush1.msra.mxu0 0.0
        %1874 = vmatprep.subr.mxu0 0.0
        %1875 = vmatpush1.msra.mxu0 0.0
        %1876 = vmatprep.subr.mxu0 0.0
        %1877 = vmatpush1.msra.mxu0 0.0
        %1878 = vmatprep.mubr.f32.mxu0 0.0
        %1879 = vmatmul.mubr.f32.gmra.mrb[0].mxu0 %v1812
        %v1880 = vpop.f32.mrb[0].mxu0
        %v1881 = vadd.f32 %v1810, %v1880
        %v1882 = vpop.f32.mrb[0].mxu0
        %v1883 = vadd.f32 %v1810, %v1882
        %1884 = vdwg.mxu0
        %v1885 = vld [vmem:[#allocation5] sm:$0xff]
        %v1886 = vld [vmem:[#allocation5 + $0x8] sm:$0xff]
        %v1887 = vld [vmem:[#allocation5 + $0x10] sm:$0xff]
        %v1888 = vld [vmem:[#allocation5 + $0x18] sm:$0xff]
        %v1889 = vld [vmem:[#allocation5 + $0x20] sm:$0xff]
        %v1890 = vld [vmem:[#allocation5 + $0x28] sm:$0xff]
        %v1891 = vld [vmem:[#allocation5 + $0x30] sm:$0xff]
        %v1892 = vld [vmem:[#allocation5 + $0x38] sm:$0xff]
        %v1893 = vld [vmem:[#allocation5 + $0x40] sm:$0xff]
        %v1894 = vld [vmem:[#allocation5 + $0x48] sm:$0xff]
        %v1895 = vld [vmem:[#allocation5 + $0x50] sm:$0xff]
        %v1896 = vld [vmem:[#allocation5 + $0x58] sm:$0xff]
        %v1897 = vld [vmem:[#allocation5 + $0x60] sm:$0xff]
        %v1898 = vld [vmem:[#allocation5 + $0x68] sm:$0xff]
        %v1899 = vld [vmem:[#allocation5 + $0x70] sm:$0xff]
        %v1900 = vld [vmem:[#allocation5 + $0x78] sm:$0xff]
        %v1901 = vld [vmem:[#allocation5 + $0x80] sm:$0xff]
        %v1902 = vld [vmem:[#allocation5 + $0x88] sm:$0xff]
        %v1903 = vld [vmem:[#allocation5 + $0x90] sm:$0xff]
        %v1904 = vld [vmem:[#allocation5 + $0x98] sm:$0xff]
        %v1905 = vld [vmem:[#allocation5 + $0xa0] sm:$0xff]
        %v1906 = vld [vmem:[#allocation5 + $0xa8] sm:$0xff]
        %v1907 = vld [vmem:[#allocation5 + $0xb0] sm:$0xff]
        %v1908 = vld [vmem:[#allocation5 + $0xb8] sm:$0xff]
        %v1909 = vld [vmem:[#allocation5 + $0xc0] sm:$0xff]
        %v1910 = vld [vmem:[#allocation5 + $0xc8] sm:$0xff]
        %v1911 = vld [vmem:[#allocation5 + $0xd0] sm:$0xff]
        %v1912 = vld [vmem:[#allocation5 + $0xd8] sm:$0xff]
        %v1913 = vld [vmem:[#allocation5 + $0xe0] sm:$0xff]
        %v1914 = vld [vmem:[#allocation5 + $0xe8] sm:$0xff]
        %v1915 = vld [vmem:[#allocation5 + $0xf0] sm:$0xff]
        %v1916 = vld [vmem:[#allocation5 + $0xf8] sm:$0xff]
        %v1917 = vld [vmem:[#allocation5 + $0x100] sm:$0xff]
        %v1918 = vld [vmem:[#allocation5 + $0x108] sm:$0xff]
        %v1919 = vld [vmem:[#allocation5 + $0x110] sm:$0xff]
        %v1920 = vld [vmem:[#allocation5 + $0x118] sm:$0xff]
        %v1921 = vld [vmem:[#allocation5 + $0x120] sm:$0xff]
        %v1922 = vld [vmem:[#allocation5 + $0x128] sm:$0xff]
        %v1923 = vld [vmem:[#allocation5 + $0x130] sm:$0xff]
        %v1924 = vld [vmem:[#allocation5 + $0x138] sm:$0xff]
        %v1925 = vld [vmem:[#allocation5 + $0x140] sm:$0xff]
        %v1926 = vld [vmem:[#allocation5 + $0x148] sm:$0xff]
        %v1927 = vld [vmem:[#allocation5 + $0x150] sm:$0xff]
        %v1928 = vld [vmem:[#allocation5 + $0x158] sm:$0xff]
        %v1929 = vld [vmem:[#allocation5 + $0x160] sm:$0xff]
        %v1930 = vld [vmem:[#allocation5 + $0x168] sm:$0xff]
        %v1931 = vld [vmem:[#allocation5 + $0x170] sm:$0xff]
        %v1932 = vld [vmem:[#allocation5 + $0x178] sm:$0xff]
        %v1933 = vld [vmem:[#allocation5 + $0x180] sm:$0xff]
        %v1934 = vld [vmem:[#allocation5 + $0x188] sm:$0xff]
        %v1935 = vld [vmem:[#allocation5 + $0x190] sm:$0xff]
        %v1936 = vld [vmem:[#allocation5 + $0x198] sm:$0xff]
        %v1937 = vld [vmem:[#allocation5 + $0x1a0] sm:$0xff]
        %v1938 = vld [vmem:[#allocation5 + $0x1a8] sm:$0xff]
        %v1939 = vld [vmem:[#allocation5 + $0x1b0] sm:$0xff]
        %v1940 = vld [vmem:[#allocation5 + $0x1b8] sm:$0xff]
        %v1941 = vld [vmem:[#allocation5 + $0x1c0] sm:$0xff]
        %v1942 = vld [vmem:[#allocation5 + $0x1c8] sm:$0xff]
        %v1943 = vld [vmem:[#allocation5 + $0x1d0] sm:$0xff]
        %v1944 = vld [vmem:[#allocation5 + $0x1d8] sm:$0xff]
        %v1945 = vld [vmem:[#allocation5 + $0x1e0] sm:$0xff]
        %v1946 = vld [vmem:[#allocation5 + $0x1e8] sm:$0xff]
        %v1947 = vld [vmem:[#allocation5 + $0x1f0] sm:$0xff]
        %v1948 = vld [vmem:[#allocation5 + $0x1f8] sm:$0xff]
        %v1949 = vld [vmem:[#allocation5 + $0x200] sm:$0xff]
        %v1950 = vld [vmem:[#allocation5 + $0x208] sm:$0xff]
        %v1951 = vld [vmem:[#allocation5 + $0x210] sm:$0xff]
        %v1952 = vld [vmem:[#allocation5 + $0x218] sm:$0xff]
        %v1953 = vld [vmem:[#allocation5 + $0x220] sm:$0xff]
        %v1954 = vld [vmem:[#allocation5 + $0x228] sm:$0xff]
        %v1955 = vld [vmem:[#allocation5 + $0x230] sm:$0xff]
        %v1956 = vld [vmem:[#allocation5 + $0x238] sm:$0xff]
        %v1957 = vld [vmem:[#allocation5 + $0x240] sm:$0xff]
        %v1958 = vld [vmem:[#allocation5 + $0x248] sm:$0xff]
        %v1959 = vld [vmem:[#allocation5 + $0x250] sm:$0xff]
        %v1960 = vld [vmem:[#allocation5 + $0x258] sm:$0xff]
        %v1961 = vld [vmem:[#allocation5 + $0x260] sm:$0xff]
        %v1962 = vld [vmem:[#allocation5 + $0x268] sm:$0xff]
        %v1963 = vld [vmem:[#allocation5 + $0x270] sm:$0xff]
        %v1964 = vld [vmem:[#allocation5 + $0x278] sm:$0xff]
        %v1965 = vld [vmem:[#allocation5 + $0x280] sm:$0xff]
        %v1966 = vld [vmem:[#allocation5 + $0x288] sm:$0xff]
        %v1967 = vld [vmem:[#allocation5 + $0x290] sm:$0xff]
        %v1968 = vld [vmem:[#allocation5 + $0x298] sm:$0xff]
        %v1969 = vld [vmem:[#allocation5 + $0x2a0] sm:$0xff]
        %v1970 = vld [vmem:[#allocation5 + $0x2a8] sm:$0xff]
        %v1971 = vld [vmem:[#allocation5 + $0x2b0] sm:$0xff]
        %v1972 = vld [vmem:[#allocation5 + $0x2b8] sm:$0xff]
        %v1973 = vld [vmem:[#allocation5 + $0x2c0] sm:$0xff]
        %v1974 = vld [vmem:[#allocation5 + $0x2c8] sm:$0xff]
        %v1975 = vld [vmem:[#allocation5 + $0x2d0] sm:$0xff]
        %v1976 = vld [vmem:[#allocation5 + $0x2d8] sm:$0xff]
        %v1977 = vld [vmem:[#allocation5 + $0x2e0] sm:$0xff]
        %v1978 = vld [vmem:[#allocation5 + $0x2e8] sm:$0xff]
        %v1979 = vld [vmem:[#allocation5 + $0x2f0] sm:$0xff]
        %v1980 = vld [vmem:[#allocation5 + $0x2f8] sm:$0xff]
        %v1981 = vld [vmem:[#allocation5 + $0x300] sm:$0xff]
        %v1982 = vld [vmem:[#allocation5 + $0x308] sm:$0xff]
        %v1983 = vld [vmem:[#allocation5 + $0x310] sm:$0xff]
        %v1984 = vld [vmem:[#allocation5 + $0x318] sm:$0xff]
        %v1985 = vld [vmem:[#allocation5 + $0x320] sm:$0xff]
        %v1986 = vld [vmem:[#allocation5 + $0x328] sm:$0xff]
        %v1987 = vld [vmem:[#allocation5 + $0x330] sm:$0xff]
        %v1988 = vld [vmem:[#allocation5 + $0x338] sm:$0xff]
        %v1989 = vld [vmem:[#allocation5 + $0x340] sm:$0xff]
        %v1990 = vld [vmem:[#allocation5 + $0x348] sm:$0xff]
        %v1991 = vld [vmem:[#allocation5 + $0x350] sm:$0xff]
        %v1992 = vld [vmem:[#allocation5 + $0x358] sm:$0xff]
        %v1993 = vld [vmem:[#allocation5 + $0x360] sm:$0xff]
        %v1994 = vld [vmem:[#allocation5 + $0x368] sm:$0xff]
        %v1995 = vld [vmem:[#allocation5 + $0x370] sm:$0xff]
        %v1996 = vld [vmem:[#allocation5 + $0x378] sm:$0xff]
        %v1997 = vld [vmem:[#allocation5 + $0x380] sm:$0xff]
        %v1998 = vld [vmem:[#allocation5 + $0x388] sm:$0xff]
        %v1999 = vld [vmem:[#allocation5 + $0x390] sm:$0xff]
        %v2000 = vld [vmem:[#allocation5 + $0x398] sm:$0xff]
        %v2001 = vld [vmem:[#allocation5 + $0x3a0] sm:$0xff]
        %v2002 = vld [vmem:[#allocation5 + $0x3a8] sm:$0xff]
        %v2003 = vld [vmem:[#allocation5 + $0x3b0] sm:$0xff]
        %v2004 = vld [vmem:[#allocation5 + $0x3b8] sm:$0xff]
        %v2005 = vld [vmem:[#allocation5 + $0x3c0] sm:$0xff]
        %v2006 = vld [vmem:[#allocation5 + $0x3c8] sm:$0xff]
        %v2007 = vld [vmem:[#allocation5 + $0x3d0] sm:$0xff]
        %v2008 = vld [vmem:[#allocation5 + $0x3d8] sm:$0xff]
        %v2009 = vld [vmem:[#allocation5 + $0x3e0] sm:$0xff]
        %v2010 = vld [vmem:[#allocation5 + $0x3e8] sm:$0xff]
        %v2011 = vld [vmem:[#allocation5 + $0x3f0] sm:$0xff]
        %v2012 = vld [vmem:[#allocation5 + $0x3f8] sm:$0xff]
        %v2013 = vld [vmem:[#allocation5 + $0x400] sm:$0xff]
        %v2014 = vld [vmem:[#allocation5 + $0x408] sm:$0xff]
        %v2015 = vld [vmem:[#allocation5 + $0x410] sm:$0xff]
        %v2016 = vld [vmem:[#allocation5 + $0x418] sm:$0xff]
        %v2017 = vld [vmem:[#allocation5 + $0x420] sm:$0xff]
        %v2018 = vld [vmem:[#allocation5 + $0x428] sm:$0xff]
        %v2019 = vld [vmem:[#allocation5 + $0x430] sm:$0xff]
        %v2020 = vld [vmem:[#allocation5 + $0x438] sm:$0xff]
        %v2021 = vld [vmem:[#allocation5 + $0x440] sm:$0xff]
        %v2022 = vld [vmem:[#allocation5 + $0x448] sm:$0xff]
        %v2023 = vld [vmem:[#allocation5 + $0x450] sm:$0xff]
        %v2024 = vld [vmem:[#allocation5 + $0x458] sm:$0xff]
        %v2025 = vld [vmem:[#allocation5 + $0x460] sm:$0xff]
        %v2026 = vld [vmem:[#allocation5 + $0x468] sm:$0xff]
        %v2027 = vld [vmem:[#allocation5 + $0x470] sm:$0xff]
        %v2028 = vld [vmem:[#allocation5 + $0x478] sm:$0xff]
        %v2029 = vld [vmem:[#allocation5 + $0x480] sm:$0xff]
        %v2030 = vld [vmem:[#allocation5 + $0x488] sm:$0xff]
        %v2031 = vld [vmem:[#allocation5 + $0x490] sm:$0xff]
        %v2032 = vld [vmem:[#allocation5 + $0x498] sm:$0xff]
        %v2033 = vld [vmem:[#allocation5 + $0x4a0] sm:$0xff]
        %v2034 = vld [vmem:[#allocation5 + $0x4a8] sm:$0xff]
        %v2035 = vld [vmem:[#allocation5 + $0x4b0] sm:$0xff]
        %v2036 = vld [vmem:[#allocation5 + $0x4b8] sm:$0xff]
        %v2037 = vld [vmem:[#allocation5 + $0x4c0] sm:$0xff]
        %v2038 = vld [vmem:[#allocation5 + $0x4c8] sm:$0xff]
        %v2039 = vld [vmem:[#allocation5 + $0x4d0] sm:$0xff]
        %v2040 = vld [vmem:[#allocation5 + $0x4d8] sm:$0xff]
        %v2041 = vld [vmem:[#allocation5 + $0x4e0] sm:$0xff]
        %v2042 = vld [vmem:[#allocation5 + $0x4e8] sm:$0xff]
        %v2043 = vld [vmem:[#allocation5 + $0x4f0] sm:$0xff]
        %v2044 = vld [vmem:[#allocation5 + $0x4f8] sm:$0xff]
        %v2045 = vld [vmem:[#allocation5 + $0x500] sm:$0xff]
        %v2046 = vld [vmem:[#allocation5 + $0x508] sm:$0xff]
        %v2047 = vld [vmem:[#allocation5 + $0x510] sm:$0xff]
        %v2048 = vld [vmem:[#allocation5 + $0x518] sm:$0xff]
        %v2049 = vld [vmem:[#allocation5 + $0x520] sm:$0xff]
        %v2050 = vld [vmem:[#allocation5 + $0x528] sm:$0xff]
        %v2051 = vld [vmem:[#allocation5 + $0x530] sm:$0xff]
        %v2052 = vld [vmem:[#allocation5 + $0x538] sm:$0xff]
        %v2053 = vld [vmem:[#allocation5 + $0x540] sm:$0xff]
        %v2054 = vld [vmem:[#allocation5 + $0x548] sm:$0xff]
        %v2055 = vld [vmem:[#allocation5 + $0x550] sm:$0xff]
        %v2056 = vld [vmem:[#allocation5 + $0x558] sm:$0xff]
        %v2057 = vld [vmem:[#allocation5 + $0x560] sm:$0xff]
        %v2058 = vld [vmem:[#allocation5 + $0x568] sm:$0xff]
        %v2059 = vld [vmem:[#allocation5 + $0x570] sm:$0xff]
        %v2060 = vld [vmem:[#allocation5 + $0x578] sm:$0xff]
        %v2061 = vld [vmem:[#allocation5 + $0x580] sm:$0xff]
        %v2062 = vld [vmem:[#allocation5 + $0x588] sm:$0xff]
        %v2063 = vld [vmem:[#allocation5 + $0x590] sm:$0xff]
        %v2064 = vld [vmem:[#allocation5 + $0x598] sm:$0xff]
        %v2065 = vld [vmem:[#allocation5 + $0x5a0] sm:$0xff]
        %v2066 = vld [vmem:[#allocation5 + $0x5a8] sm:$0xff]
        %v2067 = vld [vmem:[#allocation5 + $0x5b0] sm:$0xff]
        %v2068 = vld [vmem:[#allocation5 + $0x5b8] sm:$0xff]
        %v2069 = vld [vmem:[#allocation5 + $0x5c0] sm:$0xff]
        %v2070 = vld [vmem:[#allocation5 + $0x5c8] sm:$0xff]
        %v2071 = vld [vmem:[#allocation5 + $0x5d0] sm:$0xff]
        %v2072 = vld [vmem:[#allocation5 + $0x5d8] sm:$0xff]
        %v2073 = vld [vmem:[#allocation5 + $0x5e0] sm:$0xff]
        %v2074 = vld [vmem:[#allocation5 + $0x5e8] sm:$0xff]
        %v2075 = vld [vmem:[#allocation5 + $0x5f0] sm:$0xff]
        %v2076 = vld [vmem:[#allocation5 + $0x5f8] sm:$0xff]
        %2077 = vmatprep.subr.mxu0 %v1886
        %2078 = vmatpush1.msra.mxu0 %v1885
        %2079 = vmatprep.subr.mxu0 %v1892
        %2080 = vmatpush1.msra.mxu0 %v1891
        %2081 = vmatprep.subr.mxu0 %v1898
        %2082 = vmatpush1.msra.mxu0 %v1897
        %2083 = vmatprep.subr.mxu0 %v1904
        %2084 = vmatpush1.msra.mxu0 %v1903
        %2085 = vmatprep.subr.mxu0 %v1910
        %2086 = vmatpush1.msra.mxu0 %v1909
        %2087 = vmatprep.subr.mxu0 %v1916
        %2088 = vmatpush1.msra.mxu0 %v1915
        %2089 = vmatprep.subr.mxu0 %v1922
        %2090 = vmatpush1.msra.mxu0 %v1921
        %2091 = vmatprep.subr.mxu0 %v1928
        %2092 = vmatpush1.msra.mxu0 %v1927
        %2093 = vmatprep.subr.mxu0 %v1934
        %2094 = vmatpush1.msra.mxu0 %v1933
        %2095 = vmatprep.subr.mxu0 %v1940
        %2096 = vmatpush1.msra.mxu0 %v1939
        %2097 = vmatprep.subr.mxu0 %v1946
        %2098 = vmatpush1.msra.mxu0 %v1945
        %2099 = vmatprep.subr.mxu0 %v1952
        %2100 = vmatpush1.msra.mxu0 %v1951
        %2101 = vmatprep.subr.mxu0 %v1958
        %2102 = vmatpush1.msra.mxu0 %v1957
        %2103 = vmatprep.subr.mxu0 %v1964
        %2104 = vmatpush1.msra.mxu0 %v1963
        %2105 = vmatprep.subr.mxu0 %v1970
        %2106 = vmatpush1.msra.mxu0 %v1969
        %2107 = vmatprep.subr.mxu0 %v1976
        %2108 = vmatpush1.msra.mxu0 %v1975
        %2109 = vmatprep.subr.mxu0 %v1982
        %2110 = vmatpush1.msra.mxu0 %v1981
        %2111 = vmatprep.subr.mxu0 %v1988
        %2112 = vmatpush1.msra.mxu0 %v1987
        %2113 = vmatprep.subr.mxu0 %v1994
        %2114 = vmatpush1.msra.mxu0 %v1993
        %2115 = vmatprep.subr.mxu0 %v2000
        %2116 = vmatpush1.msra.mxu0 %v1999
        %2117 = vmatprep.subr.mxu0 %v2006
        %2118 = vmatpush1.msra.mxu0 %v2005
        %2119 = vmatprep.subr.mxu0 %v2012
        %2120 = vmatpush1.msra.mxu0 %v2011
        %2121 = vmatprep.subr.mxu0 %v2018
        %2122 = vmatpush1.msra.mxu0 %v2017
        %2123 = vmatprep.subr.mxu0 %v2024
        %2124 = vmatpush1.msra.mxu0 %v2023
        %2125 = vmatprep.subr.mxu0 %v2030
        %2126 = vmatpush1.msra.mxu0 %v2029
        %2127 = vmatprep.subr.mxu0 %v2036
        %2128 = vmatpush1.msra.mxu0 %v2035
        %2129 = vmatprep.subr.mxu0 %v2042
        %2130 = vmatpush1.msra.mxu0 %v2041
        %2131 = vmatprep.subr.mxu0 %v2048
        %2132 = vmatpush1.msra.mxu0 %v2047
        %2133 = vmatprep.subr.mxu0 %v2054
        %2134 = vmatpush1.msra.mxu0 %v2053
        %2135 = vmatprep.subr.mxu0 %v2060
        %2136 = vmatpush1.msra.mxu0 %v2059
        %2137 = vmatprep.subr.mxu0 %v2066
        %2138 = vmatpush1.msra.mxu0 %v2065
        %2139 = vmatprep.subr.mxu0 %v2072
        %2140 = vmatpush1.msra.mxu0 %v2071
        %2141 = vmatprep.mubr.f32.mxu0 %v1883
        %2142 = vmatmul.mubr.f32.gmra.mrb[0].mxu0 %v1881
        %v2143 = vpop.f32.mrb[0].mxu0
        %v2144 = vadd.f32 0.0, %v2143
        %v2145 = vpop.f32.mrb[0].mxu0
        %v2146 = vadd.f32 0.0, %v2145
        %2147 = vdwg.mxu0
        %2148 = vmatprep.subr.mxu0 %v1888
        %2149 = vmatpush1.msra.mxu0 %v1887
        %2150 = vmatprep.subr.mxu0 %v1894
        %2151 = vmatpush1.msra.mxu0 %v1893
        %2152 = vmatprep.subr.mxu0 %v1900
        %2153 = vmatpush1.msra.mxu0 %v1899
        %2154 = vmatprep.subr.mxu0 %v1906
        %2155 = vmatpush1.msra.mxu0 %v1905
        %2156 = vmatprep.subr.mxu0 %v1912
        %2157 = vmatpush1.msra.mxu0 %v1911
        %2158 = vmatprep.subr.mxu0 %v1918
        %2159 = vmatpush1.msra.mxu0 %v1917
        %2160 = vmatprep.subr.mxu0 %v1924
        %2161 = vmatpush1.msra.mxu0 %v1923
        %2162 = vmatprep.subr.mxu0 %v1930
        %2163 = vmatpush1.msra.mxu0 %v1929
        %2164 = vmatprep.subr.mxu0 %v1936
        %2165 = vmatpush1.msra.mxu0 %v1935
        %2166 = vmatprep.subr.mxu0 %v1942
        %2167 = vmatpush1.msra.mxu0 %v1941
        %2168 = vmatprep.subr.mxu0 %v1948
        %2169 = vmatpush1.msra.mxu0 %v1947
        %2170 = vmatprep.subr.mxu0 %v1954
        %2171 = vmatpush1.msra.mxu0 %v1953
        %2172 = vmatprep.subr.mxu0 %v1960
        %2173 = vmatpush1.msra.mxu0 %v1959
        %2174 = vmatprep.subr.mxu0 %v1966
        %2175 = vmatpush1.msra.mxu0 %v1965
        %2176 = vmatprep.subr.mxu0 %v1972
        %2177 = vmatpush1.msra.mxu0 %v1971
        %2178 = vmatprep.subr.mxu0 %v1978
        %2179 = vmatpush1.msra.mxu0 %v1977
        %2180 = vmatprep.subr.mxu0 %v1984
        %2181 = vmatpush1.msra.mxu0 %v1983
        %2182 = vmatprep.subr.mxu0 %v1990
        %2183 = vmatpush1.msra.mxu0 %v1989
        %2184 = vmatprep.subr.mxu0 %v1996
        %2185 = vmatpush1.msra.mxu0 %v1995
        %2186 = vmatprep.subr.mxu0 %v2002
        %2187 = vmatpush1.msra.mxu0 %v2001
        %2188 = vmatprep.subr.mxu0 %v2008
        %2189 = vmatpush1.msra.mxu0 %v2007
        %2190 = vmatprep.subr.mxu0 %v2014
        %2191 = vmatpush1.msra.mxu0 %v2013
        %2192 = vmatprep.subr.mxu0 %v2020
        %2193 = vmatpush1.msra.mxu0 %v2019
        %2194 = vmatprep.subr.mxu0 %v2026
        %2195 = vmatpush1.msra.mxu0 %v2025
        %2196 = vmatprep.subr.mxu0 %v2032
        %2197 = vmatpush1.msra.mxu0 %v2031
        %2198 = vmatprep.subr.mxu0 %v2038
        %2199 = vmatpush1.msra.mxu0 %v2037
        %2200 = vmatprep.subr.mxu0 %v2044
        %2201 = vmatpush1.msra.mxu0 %v2043
        %2202 = vmatprep.subr.mxu0 %v2050
        %2203 = vmatpush1.msra.mxu0 %v2049
        %2204 = vmatprep.subr.mxu0 %v2056
        %2205 = vmatpush1.msra.mxu0 %v2055
        %2206 = vmatprep.subr.mxu0 %v2062
        %2207 = vmatpush1.msra.mxu0 %v2061
        %2208 = vmatprep.subr.mxu0 %v2068
        %2209 = vmatpush1.msra.mxu0 %v2067
        %2210 = vmatprep.subr.mxu0 %v2074
        %2211 = vmatpush1.msra.mxu0 %v2073
        %2212 = vmatprep.mubr.f32.mxu0 %v1883
        %2213 = vmatmul.mubr.f32.gmra.mrb[0].mxu0 %v1881
        %v2214 = vpop.f32.mrb[0].mxu0
        %v2215 = vadd.f32 0.0, %v2214
        %v2216 = vpop.f32.mrb[0].mxu0
        %v2217 = vadd.f32 0.0, %v2216
        %2218 = vdwg.mxu0
        %2219 = vmatprep.subr.mxu0 %v1890
        %2220 = vmatpush1.msra.mxu0 %v1889
        %2221 = vmatprep.subr.mxu0 %v1896
        %2222 = vmatpush1.msra.mxu0 %v1895
        %2223 = vmatprep.subr.mxu0 %v1902
        %2224 = vmatpush1.msra.mxu0 %v1901
        %2225 = vmatprep.subr.mxu0 %v1908
        %2226 = vmatpush1.msra.mxu0 %v1907
        %2227 = vmatprep.subr.mxu0 %v1914
        %2228 = vmatpush1.msra.mxu0 %v1913
        %2229 = vmatprep.subr.mxu0 %v1920
        %2230 = vmatpush1.msra.mxu0 %v1919
        %2231 = vmatprep.subr.mxu0 %v1926
        %2232 = vmatpush1.msra.mxu0 %v1925
        %2233 = vmatprep.subr.mxu0 %v1932
        %2234 = vmatpush1.msra.mxu0 %v1931
        %2235 = vmatprep.subr.mxu0 %v1938
        %2236 = vmatpush1.msra.mxu0 %v1937
        %2237 = vmatprep.subr.mxu0 %v1944
        %2238 = vmatpush1.msra.mxu0 %v1943
        %2239 = vmatprep.subr.mxu0 %v1950
        %2240 = vmatpush1.msra.mxu0 %v1949
        %2241 = vmatprep.subr.mxu0 %v1956
        %2242 = vmatpush1.msra.mxu0 %v1955
        %2243 = vmatprep.subr.mxu0 %v1962
        %2244 = vmatpush1.msra.mxu0 %v1961
        %2245 = vmatprep.subr.mxu0 %v1968
        %2246 = vmatpush1.msra.mxu0 %v1967
        %2247 = vmatprep.subr.mxu0 %v1974
        %2248 = vmatpush1.msra.mxu0 %v1973
        %2249 = vmatprep.subr.mxu0 %v1980
        %2250 = vmatpush1.msra.mxu0 %v1979
        %2251 = vmatprep.subr.mxu0 %v1986
        %2252 = vmatpush1.msra.mxu0 %v1985
        %2253 = vmatprep.subr.mxu0 %v1992
        %2254 = vmatpush1.msra.mxu0 %v1991
        %2255 = vmatprep.subr.mxu0 %v1998
        %2256 = vmatpush1.msra.mxu0 %v1997
        %2257 = vmatprep.subr.mxu0 %v2004
        %2258 = vmatpush1.msra.mxu0 %v2003
        %2259 = vmatprep.subr.mxu0 %v2010
        %2260 = vmatpush1.msra.mxu0 %v2009
        %2261 = vmatprep.subr.mxu0 %v2016
        %2262 = vmatpush1.msra.mxu0 %v2015
        %2263 = vmatprep.subr.mxu0 %v2022
        %2264 = vmatpush1.msra.mxu0 %v2021
        %2265 = vmatprep.subr.mxu0 %v2028
        %2266 = vmatpush1.msra.mxu0 %v2027
        %2267 = vmatprep.subr.mxu0 %v2034
        %2268 = vmatpush1.msra.mxu0 %v2033
        %2269 = vmatprep.subr.mxu0 %v2040
        %2270 = vmatpush1.msra.mxu0 %v2039
        %2271 = vmatprep.subr.mxu0 %v2046
        %2272 = vmatpush1.msra.mxu0 %v2045
        %2273 = vmatprep.subr.mxu0 %v2052
        %2274 = vmatpush1.msra.mxu0 %v2051
        %2275 = vmatprep.subr.mxu0 %v2058
        %2276 = vmatpush1.msra.mxu0 %v2057
        %2277 = vmatprep.subr.mxu0 %v2064
        %2278 = vmatpush1.msra.mxu0 %v2063
        %2279 = vmatprep.subr.mxu0 %v2070
        %2280 = vmatpush1.msra.mxu0 %v2069
        %2281 = vmatprep.subr.mxu0 %v2076
        %2282 = vmatpush1.msra.mxu0 %v2075
        %2283 = vmatprep.mubr.f32.mxu0 %v1883
        %2284 = vmatmul.mubr.f32.gmra.mrb[0].mxu0 %v1881
        %v2285 = vpop.f32.mrb[0].mxu0
        %v2286 = vadd.f32 0.0, %v2285
        %v2287 = vpop.f32.mrb[0].mxu0
        %v2288 = vadd.f32 0.0, %v2287
        %2289 = vdwg.mxu0
        %v2290 = vxor.u32 %v2144, 2147483648
        %v2291 = vxor.u32 %v2146, 2147483648
        %v2292 = vxor.u32 %v2215, 2147483648
        %v2293 = vxor.u32 %v2217, 2147483648
        %v2294 = vxor.u32 %v2286, 2147483648
        %v2295 = vxor.u32 %v2288, 2147483648
        %v2296 = vmul.f32 %v2290, 1.442695
        %v2297 = vpow.pop %v2296
        %v2298 = vmul.f32 %v2291, 1.442695
        %v2299 = vpow.pop %v2298
        %v2300 = vmul.f32 %v2292, 1.442695
        %v2301 = vpow.pop %v2300
        %v2302 = vmul.f32 %v2293, 1.442695
        %v2303 = vpow.pop %v2302
        %v2304 = vmul.f32 %v2294, 1.442695
        %v2305 = vpow.pop %v2304
        %v2306 = vmul.f32 %v2295, 1.442695
        %v2307 = vpow.pop %v2306
        %v2308 = vadd.f32 %v2297, 1.0
        %v2309 = vadd.f32 %v2299, 1.0
        %v2310 = vadd.f32 %v2301, 1.0
        %v2311 = vadd.f32 %v2303, 1.0
        %v2312 = vadd.f32 %v2305, 1.0
        %v2313 = vadd.f32 %v2307, 1.0
        %v2314 = vrcp.pop %v2308
        %v2315 = vmul.f32 1.0, %v2314
        %v2316 = vrcp.pop %v2309
        %v2317 = vmul.f32 1.0, %v2316
        %v2318 = vrcp.pop %v2310
        %v2319 = vmul.f32 1.0, %v2318
        %v2320 = vrcp.pop %v2311
        %v2321 = vmul.f32 1.0, %v2320
        %v2322 = vrcp.pop %v2312
        %v2323 = vmul.f32 1.0, %v2322
        %v2324 = vrcp.pop %v2313
        %v2325 = vmul.f32 1.0, %v2324
        %v2332 = vcombine.low %v2315, %v2317
        %v2333 = vcombine.low %v2319, %v2321
        %v2334 = vcombine.low %v2323, %v2325
        %v2336 = vunpack.c.l.s4 1966171168
        %v2337 = vunpack.c.0.s8 %v2336
        %v2338 = vlaneseq
        %v2339 = vshrl.u32 %v2338, 7
        %v2340 = vsub.s32 %v2337, %v2339
        %v2341 = vrot.slane %v2332, %v2340
        %v2343 = vunpack.c.l.s4 1966171168
        %v2344 = vunpack.c.0.s8 %v2343
        %v2345 = vlaneseq
        %v2346 = vshrl.u32 %v2345, 7
        %v2347 = vsub.s32 %v2344, %v2346
        %v2348 = vrot.slane %v2333, %v2347
        %v2350 = vunpack.c.l.s4 1966171168
        %v2351 = vunpack.c.0.s8 %v2350
        %v2352 = vlaneseq
        %v2353 = vshrl.u32 %v2352, 7
        %v2354 = vsub.s32 %v2351, %v2353
        %v2355 = vrot.slane %v2334, %v2354
        %v2356 = vcombine.low %v2341, %v2348
        %v2358 = vunpack.c.l.s4 1966171168
        %v2359 = vunpack.c.0.s8 %v2358
        %v2360 = vlaneseq
        %v2361 = vshrl.u32 %v2360, 7
        %v2362 = vsub.s32 %v2359, %v2361
        %v2363 = vrot.slane %v2356, %v2362
        %v2365 = vunpack.c.l.s4 1966171168
        %v2366 = vunpack.c.0.s8 %v2365
        %v2367 = vlaneseq
        %v2368 = vshrl.u32 %v2367, 7
        %v2369 = vsub.s32 %v2366, %v2368
        %v2370 = vrot.slane %v2355, %v2369
        %v2371 = vcombine.low %v2363, %v2370
        %v2373 = vlaneseq
        %vm2374 = vcmp.ge.s32.totalorder %v2373, 0
        %vm2375 = vcmp.lt.s32.totalorder %v2373, 768
        %vm2376 = vmand %vm2374, %vm2375
        %2377 = vst.msk [vmem:[%s524] sm:$0x3f] %vm2376, %v2371
        %p2378 = scmp.lt.s32.totalorder %s30, 1
        %s2379 = scalar_select %p2378, %s30, 1
        %s2380 = smul.addr %s2379, 6
        %s2381 = scalar_lea.vmem %s15, %s2380
        // Predicated region
        $region96: #{heatmap_model_forward.1} parent=79 // pred_check
          %p2382 = pneg %p368
        $region97: #{heatmap_model_forward.1} parent=79 // pred_check_branch
          %2384 = sbr.rel (%p2382) target = $region99
        $region98: #{heatmap_model_forward.1} parent=79 // pred_region
          _
        $region99: #{heatmap_model_forward.1} parent=79 // pred_fallthru
          _
      $region80: #{heatmap_model_forward.1} parent=5 // pred_fallthru
        _
      %p2385 = scmp.le.s32.totalorder 2, %s25
      // Predicated region
      $region100: #{heatmap_model_forward.1} parent=5 // pred_check
        %p2386 = pneg %p2385
      $region101: #{heatmap_model_forward.1} parent=5 // pred_check_branch
        %2388 = sbr.rel (%p2386) target = $region103
      $region102: #{heatmap_model_forward.1} parent=5 // pred_region
        %s2389 = ssub.s32 %s25, 2
        // Predicated region
        $region104: #{heatmap_model_forward.1} parent=102 // pred_check
          %p2390 = pneg %p374
        $region105: #{heatmap_model_forward.1} parent=102 // pred_check_branch
          %2392 = sbr.rel (%p2390) target = $region107
        $region106: #{heatmap_model_forward.1} parent=102 // pred_region
          %p2393 = scmp.lt.s32.totalorder %s31, 1
          %s2394 = scalar_select %p2393, %s31, 1
          %s2395 = smul.addr %s2394, 6
          %s2396 = scalar_lea.vmem %s15, %s2395
        $region107: #{heatmap_model_forward.1} parent=102 // pred_fallthru
          _
      $region103: #{heatmap_model_forward.1} parent=5 // pred_fallthru
        _
    $region6: #{heatmap_model_forward.1} parent=1 // loop_footer
      %s29 = sadd.s32 1, %s25
    $region7: #{heatmap_model_forward.1} parent=1 // loop_footer_branch
      %24 = sbr.rel target = $region3
    $region8: #{heatmap_model_forward.1} parent=1 // loop_exit
      _
    %2397 = vsyncpa [#allocation4], 1
    %s2398 = scalar_lea.sflag [#allocation4], 1
    %2399 = vsyncpa %s2398, 1
    %2400 = vsyncpa [#allocation6], 1

</llo_original>
